<compile_context>
chip_gen: v6e
topology: v6e:2x2x1
jax: 0.10.0
libtpu: 0.0.40
codegen_flags: <defaults>
</compile_context>

<pallas_src>
import functools

import jax
import jax.numpy as jnp
from jax import lax
from jax.experimental import pallas as pl
from jax.experimental.pallas import tpu as pltpu


def _sigmoid(x):
    # exact logistic via tanh: single EUP transcendental, numerically stable.
    return 0.5 * (jnp.tanh(0.5 * x) + 1.0)


# ---------------------------------------------------------------------------
# Fused kernel.  Inputs are batch-padded (Bp = ceil(B/8)*8) and time-major
# flattened: row = t*Bp + b, M = S*Bp.
# ---------------------------------------------------------------------------
def _encoder_kernel(Bp, S,
                    xc_ref, idx_ref,
                    dow_tbl_ref, hol_tbl_ref,
                    wih_c_ref, dow_g_ref, hol_g_ref, w_hh_ref, b_ref,
                    cat_ref, out_ref, h_ref, c_ref,
                    gx_ref):
    M = xc_ref.shape[0]                        # S * Bp
    H = w_hh_ref.shape[0]
    Vd = dow_tbl_ref.shape[0]                  # 7
    Vh = hol_tbl_ref.shape[0]                  # 2

    # --- one-hot categorical encodings (tiny vocabularies) -----------------
    idx = idx_ref[...]                                                # (M, 2)
    dow_oh = (idx[:, 0:1] ==
              lax.broadcasted_iota(jnp.int32, (M, Vd), 1)).astype(jnp.float32)
    hol_oh = (idx[:, 1:2] ==
              lax.broadcasted_iota(jnp.int32, (M, Vh), 1)).astype(jnp.float32)

    # --- input projection for ALL timesteps, directly in gate space --------
    # (embedding tables were folded into dow_gate / hol_gate at init, so no
    #  lane-offset concat and no (M,12) intermediate is ever built)
    gx_ref[...] = (
        jnp.dot(xc_ref[...], wih_c_ref[...], preferred_element_type=jnp.float32)
        + jnp.dot(dow_oh, dow_g_ref[...], preferred_element_type=jnp.float32)
        + jnp.dot(hol_oh, hol_g_ref[...], preferred_element_type=jnp.float32)
        + b_ref[...])                                                 # (M, 4H)

    # --- "concatenated[:, -1, :]": last timestep only, lane-padded slab ----
    last = (S - 1) * Bp
    dow_last = jnp.dot(dow_oh[last:, :], dow_tbl_ref[...],
                       preferred_element_type=jnp.float32)            # (Bp, D)
    hol_last = jnp.dot(hol_oh[last:, :], hol_tbl_ref[...],
                       preferred_element_type=jnp.float32)            # (Bp, D)
    cat_last = jnp.concatenate([xc_ref[last:, :], dow_last, hol_last], axis=-1)
    pad_w = cat_ref.shape[1] - cat_last.shape[1]
    if pad_w > 0:
        cat_last = jnp.concatenate(
            [cat_last, jnp.zeros((Bp, pad_w), jnp.float32)], axis=-1)
    cat_ref[...] = cat_last                    # single unmasked tile store

    # --- LSTM recurrence (PyTorch gate order: i, f, g, o) ------------------
    # bf16 MXU operands (halved weight push), f32 accumulate / state / EUP.
    w_hh = w_hh_ref[...].astype(jnp.bfloat16)  # hoisted: cast once, reused
    h = jnp.zeros((Bp, H), jnp.float32)
    c = jnp.zeros((Bp, H), jnp.float32)
    for t in range(S):                         # static unroll, S is small
        gates = gx_ref[t * Bp:(t + 1) * Bp, :] + jnp.dot(
            h.astype(jnp.bfloat16), w_hh,
            preferred_element_type=jnp.float32)                       # (Bp,4H)
        i_g = _sigmoid(gates[:, 0 * H:1 * H])
        f_g = _sigmoid(gates[:, 1 * H:2 * H])
        g_g = jnp.tanh(gates[:, 2 * H:3 * H])
        o_g = _sigmoid(gates[:, 3 * H:4 * H])
        c = f_g * c + i_g * g_g
        h = o_g * jnp.tanh(c)
        out_ref[:, t * H:(t + 1) * H] = h      # distinct 128-lane tile per t

    h_ref[...] = h
    c_ref[...] = c


# ---------------------------------------------------------------------------
# Parameters: weights pre-transposed, biases pre-combined, embedding tables
# pre-folded into gate space (all one-off init-time work).
# ---------------------------------------------------------------------------
def init_encoder_params(key, num_cont_var=4, embedding_dim=4, hidden_size=128,
                        num_layers=1, bidirectional=False):
    # TODO(synk): only the module defaults (num_layers=1, unidirectional) are
    # implemented; stacked / bidirectional LSTMs would need extra weight sets.
    assert num_layers == 1 and not bidirectional
    C, D, H = num_cont_var, embedding_dim, hidden_size
    in_sz = 2 * D + C
    k = jax.random.split(key, 6)
    bound = H ** -0.5
    w_ih = jax.random.uniform(k[0], (4 * H, in_sz), jnp.float32, -bound, bound)
    w_hh = jax.random.uniform(k[1], (4 * H, H), jnp.float32, -bound, bound)
    b_ih = jax.random.uniform(k[2], (4 * H,), jnp.float32, -bound, bound)
    b_hh = jax.random.uniform(k[3], (4 * H,), jnp.float32, -bound, bound)
    dow_embed = jax.random.normal(k[4], (7, D), jnp.float32)
    hol_embed = jax.random.normal(k[5], (2, D), jnp.float32)

    w_ih_t = jnp.transpose(w_ih)                      # (in_sz, 4H)
    return {
        "dow_embed": dow_embed,                       # (7, D)  (for cat_last)
        "hol_embed": hol_embed,                       # (2, D)
        "w_ih": w_ih_t,                               # (in_sz, 4H)  (reference)
        "w_ih_c": w_ih_t[:C],                         # (C, 4H)
        "dow_gate": dow_embed @ w_ih_t[C:C + D],      # (7, 4H) folded embedding
        "hol_gate": hol_embed @ w_ih_t[C + D:C + 2 * D],  # (2, 4H)
        "w_hh": jnp.transpose(w_hh),                  # (H, 4H)
        "b": (b_ih + b_hh).reshape(1, -1),            # (1, 4H) combined bias
    }


# ---------------------------------------------------------------------------
# Forward wrapper: one pallas_call, everything resident in VMEM (no grid).
# ---------------------------------------------------------------------------
def encoder_forward(params, x_cont, x_cat):
    B, S, C = x_cont.shape
    H = params["w_hh"].shape[0]
    D = params["dow_embed"].shape[1]
    Vd = params["dow_embed"].shape[0]
    Vh = params["hol_embed"].shape[0]
    cat_w = C + 2 * D
    P = ((cat_w + 127) // 128) * 128
    Bp = ((B + 7) // 8) * 8                    # pad batch to a sublane tile
    M = S * Bp

    # Batch-pad then time-major flatten (row = t*Bp + b): every per-timestep
    # block is a full (8, ...) sublane tile inside the kernel.
    xc = x_cont.astype(jnp.float32)
    idx = x_cat.astype(jnp.int32)
    pad_b = Bp - B
    if pad_b:
        xc = jnp.concatenate([xc, jnp.zeros((pad_b, S, C), jnp.float32)], 0)
        idx = jnp.concatenate([idx, jnp.zeros((pad_b, S, 2), jnp.int32)], 0)
    xc2 = jnp.transpose(xc, (1, 0, 2)).reshape(M, C)
    idx2 = jnp.transpose(idx, (1, 0, 2)).reshape(M, 2)

    vmem = pl.BlockSpec(memory_space=pltpu.MemorySpace.VMEM)

    # Advisory cost estimate so XLA schedules this tiny fused call sensibly.
    flops = int(2 * M * (C + Vd + Vh) * 4 * H      # input projection
                + 2 * M * H * 4 * H                # recurrence
                + 2 * Bp * (Vd + Vh) * D           # last-step embeddings
                + 12 * M * H)                      # gate elementwise
    transcendentals = int(5 * M * H)
    bytes_accessed = int(4 * (xc2.size + idx2.size
                              + params["dow_embed"].size
                              + params["hol_embed"].size
                              + params["w_ih_c"].size
                              + params["dow_gate"].size
                              + params["hol_gate"].size
                              + params["w_hh"].size + params["b"].size
                              + Bp * P + Bp * S * H + 2 * Bp * H))

    cat_pad, out_bm, h_n, c_n = pl.pallas_call(
        functools.partial(_encoder_kernel, Bp, S),
        out_shape=(
            jax.ShapeDtypeStruct((Bp, P), jnp.float32),      # padded cat[:, -1, :]
            jax.ShapeDtypeStruct((Bp, S * H), jnp.float32),  # batch-major LSTM out
            jax.ShapeDtypeStruct((Bp, H), jnp.float32),      # h_n
            jax.ShapeDtypeStruct((Bp, H), jnp.float32),      # c_n
        ),
        in_specs=[vmem] * 9,
        out_specs=(vmem, vmem, vmem, vmem),
        scratch_shapes=[pltpu.VMEM((M, 4 * H), jnp.float32)],   # gx scratch
        cost_estimate=pl.CostEstimate(flops=flops,
                                      transcendentals=transcendentals,
                                      bytes_accessed=bytes_accessed),
    )(xc2, idx2,
      params["dow_embed"], params["hol_embed"],
      params["w_ih_c"], params["dow_gate"], params["hol_gate"],
      params["w_hh"], params["b"])

    cat_last = cat_pad[:B, :cat_w]                       # (B, 12)
    output = out_bm[:B].reshape(B, S, H)                 # free reshape
    return cat_last, output, (h_n[:B][None], c_n[:B][None])


# ---------------------------------------------------------------------------
# Pure-JAX reference (unfolded path) for the correctness check.
# ---------------------------------------------------------------------------
def encoder_forward_ref(params, x_cont, x_cat):
    dow_emb = params["dow_embed"][x_cat[:, :, 0]]
    hol_emb = params["hol_embed"][x_cat[:, :, 1]]
    cat = jnp.concatenate([x_cont.astype(jnp.float32), dow_emb, hol_emb], axis=-1)
    B, S, _ = cat.shape
    H = params["w_hh"].shape[0]
    h = jnp.zeros((B, H), jnp.float32)
    c = jnp.zeros((B, H), jnp.float32)
    outs = []
    for t in range(S):
        gates = cat[:, t, :] @ params["w_ih"] + params["b"][0] + h @ params["w_hh"]
        i_g = _sigmoid(gates[:, :H])
        f_g = _sigmoid(gates[:, H:2 * H])
        g_g = jnp.tanh(gates[:, 2 * H:3 * H])
        o_g = _sigmoid(gates[:, 3 * H:])
        c = f_g * c + i_g * g_g
        h = o_g * jnp.tanh(c)
        outs.append(h)
    return cat[:, -1, :], jnp.stack(outs, axis=1), (h[None], c[None])


if __name__ == "__main__":
    key = jax.random.PRNGKey(0)
    kp, kc, kd, kh = jax.random.split(key, 4)

    num_cont_var, embedding_dim, hidden_size = 4, 4, 128
    B, S = 2, 8

    params = init_encoder_params(kp, num_cont_var, embedding_dim, hidden_size)
    x_cont = jax.random.normal(kc, (B, S, num_cont_var), jnp.float32)
    x_cat = jnp.stack(
        [jax.random.randint(kd, (B, S), 0, 7),
         jax.random.randint(kh, (B, S), 0, 2)], axis=-1).astype(jnp.int32)

    cat_last, output, (h_n, c_n) = encoder_forward(params, x_cont, x_cat)
    jax.block_until_ready((cat_last, output, h_n, c_n))

    r_cat, r_out, (r_h, r_c) = encoder_forward_ref(params, x_cont, x_cat)
    cat_w = 2 * embedding_dim + num_cont_var
    assert cat_last.shape == (B, cat_w)
    assert output.shape == (B, S, hidden_size)
    assert h_n.shape == (1, B, hidden_size)
    assert c_n.shape == (1, B, hidden_size)
    # cat_last is pure f32 gather/copy -> tight tolerance.
    assert jnp.allclose(cat_last, r_cat, atol=1e-5, rtol=1e-5)
    # LSTM path uses bf16 MXU operands (f32 accumulate) -> relaxed tolerance.
    assert jnp.allclose(output, r_out, atol=2e-2, rtol=2e-2)
    assert jnp.allclose(h_n, r_h, atol=2e-2, rtol=2e-2)
    assert jnp.allclose(c_n, r_c, atol=2e-2, rtol=2e-2)

    print("KERNEL_OK")
</pallas_src>

<mosaic_0001>
module attributes {stable_mosaic.version = 11 : i64} {
  func.func @_encoder_kernel(%arg0: memref<64x4xf32, #tpu.memory_space<vmem>>, %arg1: memref<64x2xi32, #tpu.memory_space<vmem>>, %arg2: memref<7x4xf32, #tpu.memory_space<vmem>>, %arg3: memref<2x4xf32, #tpu.memory_space<vmem>>, %arg4: memref<4x512xf32, #tpu.memory_space<vmem>>, %arg5: memref<7x512xf32, #tpu.memory_space<vmem>>, %arg6: memref<2x512xf32, #tpu.memory_space<vmem>>, %arg7: memref<128x512xf32, #tpu.memory_space<vmem>>, %arg8: memref<1x512xf32, #tpu.memory_space<vmem>>, %arg9: memref<8x128xf32, #tpu.memory_space<vmem>>, %arg10: memref<8x1024xf32, #tpu.memory_space<vmem>>, %arg11: memref<8x128xf32, #tpu.memory_space<vmem>>, %arg12: memref<8x128xf32, #tpu.memory_space<vmem>>, %arg13: memref<64x512xf32, #tpu.memory_space<vmem>>) attributes {dimension_semantics = [], scalar_prefetch = 0 : i64, scratch_operands = 1 : i64, tpu.core_type = #tpu.core_type<tc>} {
    %c0 = arith.constant 0 : index
    %c0_0 = arith.constant 0 : index
    %0 = vector.load %arg1[%c0, %c0_0] : memref<64x2xi32, #tpu.memory_space<vmem>>, vector<64x2xi32>
    %1 = vector.extract_strided_slice %0 {offsets = [0, 0], sizes = [64, 1], strides = [1, 1]} : vector<64x2xi32> to vector<64x1xi32>
    %2 = tpu.iota {dimensions = array<i32: 1>} : vector<64x7xi32>
    %3 = vector.broadcast %1 : vector<64x1xi32> to vector<64x7xi32>
    %4 = arith.cmpi eq, %3, %2 : vector<64x7xi32>
    %5 = arith.extui %4 : vector<64x7xi1> to vector<64x7xi32>
    %6 = arith.sitofp %5 : vector<64x7xi32> to vector<64x7xf32>
    %7 = vector.extract_strided_slice %0 {offsets = [0, 1], sizes = [64, 1], strides = [1, 1]} : vector<64x2xi32> to vector<64x1xi32>
    %8 = tpu.iota {dimensions = array<i32: 1>} : vector<64x2xi32>
    %9 = vector.broadcast %7 : vector<64x1xi32> to vector<64x2xi32>
    %10 = arith.cmpi eq, %9, %8 : vector<64x2xi32>
    %11 = arith.extui %10 : vector<64x2xi1> to vector<64x2xi32>
    %12 = arith.sitofp %11 : vector<64x2xi32> to vector<64x2xf32>
    %c0_1 = arith.constant 0 : index
    %c0_2 = arith.constant 0 : index
    %13 = vector.load %arg0[%c0_1, %c0_2] : memref<64x4xf32, #tpu.memory_space<vmem>>, vector<64x4xf32>
    %c0_3 = arith.constant 0 : index
    %c0_4 = arith.constant 0 : index
    %14 = vector.load %arg4[%c0_3, %c0_4] : memref<4x512xf32, #tpu.memory_space<vmem>>, vector<4x512xf32>
    %cst = arith.constant dense<0.000000e+00> : vector<64x512xf32>
    %15 = tpu.matmul %13, %14, %cst {dimension_numbers = #tpu.dot_dimension_numbers<[1], [0], [0], [1], [0, 0, 1, 1], [], []>} : vector<64x4xf32>, vector<4x512xf32>, vector<64x512xf32> -> vector<64x512xf32>
    %c0_5 = arith.constant 0 : index
    %c0_6 = arith.constant 0 : index
    %16 = vector.load %arg5[%c0_5, %c0_6] : memref<7x512xf32, #tpu.memory_space<vmem>>, vector<7x512xf32>
    %cst_7 = arith.constant dense<0.000000e+00> : vector<64x512xf32>
    %17 = tpu.matmul %6, %16, %cst_7 {dimension_numbers = #tpu.dot_dimension_numbers<[1], [0], [0], [1], [0, 0, 1, 1], [], []>} : vector<64x7xf32>, vector<7x512xf32>, vector<64x512xf32> -> vector<64x512xf32>
    %18 = arith.addf %15, %17 : vector<64x512xf32>
    %c0_8 = arith.constant 0 : index
    %c0_9 = arith.constant 0 : index
    %19 = vector.load %arg6[%c0_8, %c0_9] : memref<2x512xf32, #tpu.memory_space<vmem>>, vector<2x512xf32>
    %cst_10 = arith.constant dense<0.000000e+00> : vector<64x512xf32>
    %20 = tpu.matmul %12, %19, %cst_10 {dimension_numbers = #tpu.dot_dimension_numbers<[1], [0], [0], [1], [0, 0, 1, 1], [], []>} : vector<64x2xf32>, vector<2x512xf32>, vector<64x512xf32> -> vector<64x512xf32>
    %21 = arith.addf %18, %20 : vector<64x512xf32>
    %c0_11 = arith.constant 0 : index
    %c0_12 = arith.constant 0 : index
    %22 = vector.load %arg8[%c0_11, %c0_12] : memref<1x512xf32, #tpu.memory_space<vmem>>, vector<1x512xf32>
    %23 = vector.broadcast %22 : vector<1x512xf32> to vector<64x512xf32>
    %24 = arith.addf %21, %23 : vector<64x512xf32>
    %c0_13 = arith.constant 0 : index
    %c0_14 = arith.constant 0 : index
    %25 = vector.load %arg13[%c0_13, %c0_14] : memref<64x512xf32, #tpu.memory_space<vmem>>, vector<64x512xf32>
    tpu.vector_store %arg13[%c0_13, %c0_14], %24 {strides = array<i32>} : memref<64x512xf32, #tpu.memory_space<vmem>>, vector<64x512xf32>,
    %26 = vector.extract_strided_slice %6 {offsets = [56, 0], sizes = [8, 7], strides = [1, 1]} : vector<64x7xf32> to vector<8x7xf32>
    %c0_15 = arith.constant 0 : index
    %c0_16 = arith.constant 0 : index
    %27 = vector.load %arg2[%c0_15, %c0_16] : memref<7x4xf32, #tpu.memory_space<vmem>>, vector<7x4xf32>
    %cst_17 = arith.constant dense<0.000000e+00> : vector<8x4xf32>
    %28 = tpu.matmul %26, %27, %cst_17 {dimension_numbers = #tpu.dot_dimension_numbers<[1], [0], [0], [1], [0, 0, 1, 1], [], []>} : vector<8x7xf32>, vector<7x4xf32>, vector<8x4xf32> -> vector<8x4xf32>
    %29 = vector.extract_strided_slice %12 {offsets = [56, 0], sizes = [8, 2], strides = [1, 1]} : vector<64x2xf32> to vector<8x2xf32>
    %c0_18 = arith.constant 0 : index
    %c0_19 = arith.constant 0 : index
    %30 = vector.load %arg3[%c0_18, %c0_19] : memref<2x4xf32, #tpu.memory_space<vmem>>, vector<2x4xf32>
    %cst_20 = arith.constant dense<0.000000e+00> : vector<8x4xf32>
    %31 = tpu.matmul %29, %30, %cst_20 {dimension_numbers = #tpu.dot_dimension_numbers<[1], [0], [0], [1], [0, 0, 1, 1], [], []>} : vector<8x2xf32>, vector<2x4xf32>, vector<8x4xf32> -> vector<8x4xf32>
    %c56 = arith.constant 56 : index
    %c0_21 = arith.constant 0 : index
    %32 = vector.load %arg0[%c56, %c0_21] : memref<64x4xf32, #tpu.memory_space<vmem>>, vector<8x4xf32>
    %33 = tpu.concatenate %32, %28, %31 in 1 : vector<8x4xf32>, vector<8x4xf32>, vector<8x4xf32> -> vector<8x12xf32>
    %cst_22 = arith.constant 0.000000e+00 : f32
    %34 = vector.broadcast %cst_22 : f32 to vector<8x116xf32>
    %35 = tpu.concatenate %33, %34 in 1 : vector<8x12xf32>, vector<8x116xf32> -> vector<8x128xf32>
    %c0_23 = arith.constant 0 : index
    %c0_24 = arith.constant 0 : index
    %36 = vector.load %arg9[%c0_23, %c0_24] : memref<8x128xf32, #tpu.memory_space<vmem>>, vector<8x128xf32>
    tpu.vector_store %arg9[%c0_23, %c0_24], %35 {strides = array<i32>} : memref<8x128xf32, #tpu.memory_space<vmem>>, vector<8x128xf32>,
    %c0_25 = arith.constant 0 : index
    %c0_26 = arith.constant 0 : index
    %37 = vector.load %arg7[%c0_25, %c0_26] : memref<128x512xf32, #tpu.memory_space<vmem>>, vector<128x512xf32>
    %38 = arith.truncf %37 : vector<128x512xf32> to vector<128x512xbf16>
    %cst_27 = arith.constant 0.000000e+00 : f32
    %39 = vector.broadcast %cst_27 : f32 to vector<8x128xf32>
    %cst_28 = arith.constant 0.000000e+00 : f32
    %40 = vector.broadcast %cst_28 : f32 to vector<8x128xf32>
    %c0_29 = arith.constant 0 : index
    %c0_30 = arith.constant 0 : index
    %41 = vector.load %arg13[%c0_29, %c0_30] : memref<64x512xf32, #tpu.memory_space<vmem>>, vector<8x512xf32>
    %42 = arith.truncf %39 : vector<8x128xf32> to vector<8x128xbf16>
    %cst_31 = arith.constant dense<0.000000e+00> : vector<8x512xf32>
    %43 = tpu.matmul %42, %38, %cst_31 {dimension_numbers = #tpu.dot_dimension_numbers<[1], [0], [0], [1], [0, 0, 1, 1], [], []>} : vector<8x128xbf16>, vector<128x512xbf16>, vector<8x512xf32> -> vector<8x512xf32>
    %44 = arith.addf %41, %43 : vector<8x512xf32>
    %45 = vector.extract_strided_slice %44 {offsets = [0, 0], sizes = [8, 128], strides = [1, 1]} : vector<8x512xf32> to vector<8x128xf32>
    %cst_32 = arith.constant 5.000000e-01 : f32
    %46 = vector.broadcast %cst_32 : f32 to vector<8x128xf32>
    %47 = arith.mulf %46, %45 : vector<8x128xf32>
    %48 = math.tanh %47 : vector<8x128xf32>
    %cst_33 = arith.constant 1.000000e+00 : f32
    %49 = vector.broadcast %cst_33 : f32 to vector<8x128xf32>
    %50 = arith.addf %48, %49 : vector<8x128xf32>
    %cst_34 = arith.constant 5.000000e-01 : f32
    %51 = vector.broadcast %cst_34 : f32 to vector<8x128xf32>
    %52 = arith.mulf %51, %50 : vector<8x128xf32>
    %53 = vector.extract_strided_slice %44 {offsets = [0, 128], sizes = [8, 128], strides = [1, 1]} : vector<8x512xf32> to vector<8x128xf32>
    %cst_35 = arith.constant 5.000000e-01 : f32
    %54 = vector.broadcast %cst_35 : f32 to vector<8x128xf32>
    %55 = arith.mulf %54, %53 : vector<8x128xf32>
    %56 = math.tanh %55 : vector<8x128xf32>
    %cst_36 = arith.constant 1.000000e+00 : f32
    %57 = vector.broadcast %cst_36 : f32 to vector<8x128xf32>
    %58 = arith.addf %56, %57 : vector<8x128xf32>
    %cst_37 = arith.constant 5.000000e-01 : f32
    %59 = vector.broadcast %cst_37 : f32 to vector<8x128xf32>
    %60 = arith.mulf %59, %58 : vector<8x128xf32>
    %61 = vector.extract_strided_slice %44 {offsets = [0, 256], sizes = [8, 128], strides = [1, 1]} : vector<8x512xf32> to vector<8x128xf32>
    %62 = math.tanh %61 : vector<8x128xf32>
    %63 = vector.extract_strided_slice %44 {offsets = [0, 384], sizes = [8, 128], strides = [1, 1]} : vector<8x512xf32> to vector<8x128xf32>
    %cst_38 = arith.constant 5.000000e-01 : f32
    %64 = vector.broadcast %cst_38 : f32 to vector<8x128xf32>
    %65 = arith.mulf %64, %63 : vector<8x128xf32>
    %66 = math.tanh %65 : vector<8x128xf32>
    %cst_39 = arith.constant 1.000000e+00 : f32
    %67 = vector.broadcast %cst_39 : f32 to vector<8x128xf32>
    %68 = arith.addf %66, %67 : vector<8x128xf32>
    %cst_40 = arith.constant 5.000000e-01 : f32
    %69 = vector.broadcast %cst_40 : f32 to vector<8x128xf32>
    %70 = arith.mulf %69, %68 : vector<8x128xf32>
    %71 = arith.mulf %60, %40 : vector<8x128xf32>
    %72 = arith.mulf %52, %62 : vector<8x128xf32>
    %73 = arith.addf %71, %72 : vector<8x128xf32>
    %74 = math.tanh %73 : vector<8x128xf32>
    %75 = arith.mulf %70, %74 : vector<8x128xf32>
    %c0_41 = arith.constant 0 : index
    %c0_42 = arith.constant 0 : index
    %76 = vector.load %arg10[%c0_41, %c0_42] : memref<8x1024xf32, #tpu.memory_space<vmem>>, vector<8x128xf32>
    tpu.vector_store %arg10[%c0_41, %c0_42], %75 {strides = array<i32>} : memref<8x1024xf32, #tpu.memory_space<vmem>>, vector<8x128xf32>,
    %c8 = arith.constant 8 : index
    %c0_43 = arith.constant 0 : index
    %77 = vector.load %arg13[%c8, %c0_43] : memref<64x512xf32, #tpu.memory_space<vmem>>, vector<8x512xf32>
    %78 = arith.truncf %75 : vector<8x128xf32> to vector<8x128xbf16>
    %cst_44 = arith.constant dense<0.000000e+00> : vector<8x512xf32>
    %79 = tpu.matmul %78, %38, %cst_44 {dimension_numbers = #tpu.dot_dimension_numbers<[1], [0], [0], [1], [0, 0, 1, 1], [], []>} : vector<8x128xbf16>, vector<128x512xbf16>, vector<8x512xf32> -> vector<8x512xf32>
    %80 = arith.addf %77, %79 : vector<8x512xf32>
    %81 = vector.extract_strided_slice %80 {offsets = [0, 0], sizes = [8, 128], strides = [1, 1]} : vector<8x512xf32> to vector<8x128xf32>
    %cst_45 = arith.constant 5.000000e-01 : f32
    %82 = vector.broadcast %cst_45 : f32 to vector<8x128xf32>
    %83 = arith.mulf %82, %81 : vector<8x128xf32>
    %84 = math.tanh %83 : vector<8x128xf32>
    %cst_46 = arith.constant 1.000000e+00 : f32
    %85 = vector.broadcast %cst_46 : f32 to vector<8x128xf32>
    %86 = arith.addf %84, %85 : vector<8x128xf32>
    %cst_47 = arith.constant 5.000000e-01 : f32
    %87 = vector.broadcast %cst_47 : f32 to vector<8x128xf32>
    %88 = arith.mulf %87, %86 : vector<8x128xf32>
    %89 = vector.extract_strided_slice %80 {offsets = [0, 128], sizes = [8, 128], strides = [1, 1]} : vector<8x512xf32> to vector<8x128xf32>
    %cst_48 = arith.constant 5.000000e-01 : f32
    %90 = vector.broadcast %cst_48 : f32 to vector<8x128xf32>
    %91 = arith.mulf %90, %89 : vector<8x128xf32>
    %92 = math.tanh %91 : vector<8x128xf32>
    %cst_49 = arith.constant 1.000000e+00 : f32
    %93 = vector.broadcast %cst_49 : f32 to vector<8x128xf32>
    %94 = arith.addf %92, %93 : vector<8x128xf32>
    %cst_50 = arith.constant 5.000000e-01 : f32
    %95 = vector.broadcast %cst_50 : f32 to vector<8x128xf32>
    %96 = arith.mulf %95, %94 : vector<8x128xf32>
    %97 = vector.extract_strided_slice %80 {offsets = [0, 256], sizes = [8, 128], strides = [1, 1]} : vector<8x512xf32> to vector<8x128xf32>
    %98 = math.tanh %97 : vector<8x128xf32>
    %99 = vector.extract_strided_slice %80 {offsets = [0, 384], sizes = [8, 128], strides = [1, 1]} : vector<8x512xf32> to vector<8x128xf32>
    %cst_51 = arith.constant 5.000000e-01 : f32
    %100 = vector.broadcast %cst_51 : f32 to vector<8x128xf32>
    %101 = arith.mulf %100, %99 : vector<8x128xf32>
    %102 = math.tanh %101 : vector<8x128xf32>
    %cst_52 = arith.constant 1.000000e+00 : f32
    %103 = vector.broadcast %cst_52 : f32 to vector<8x128xf32>
    %104 = arith.addf %102, %103 : vector<8x128xf32>
    %cst_53 = arith.constant 5.000000e-01 : f32
    %105 = vector.broadcast %cst_53 : f32 to vector<8x128xf32>
    %106 = arith.mulf %105, %104 : vector<8x128xf32>
    %107 = arith.mulf %96, %73 : vector<8x128xf32>
    %108 = arith.mulf %88, %98 : vector<8x128xf32>
    %109 = arith.addf %107, %108 : vector<8x128xf32>
    %110 = math.tanh %109 : vector<8x128xf32>
    %111 = arith.mulf %106, %110 : vector<8x128xf32>
    %c0_54 = arith.constant 0 : index
    %c128 = arith.constant 128 : index
    %112 = vector.load %arg10[%c0_54, %c128] : memref<8x1024xf32, #tpu.memory_space<vmem>>, vector<8x128xf32>
    tpu.vector_store %arg10[%c0_54, %c128], %111 {strides = array<i32>} : memref<8x1024xf32, #tpu.memory_space<vmem>>, vector<8x128xf32>,
    %c16 = arith.constant 16 : index
    %c0_55 = arith.constant 0 : index
    %113 = vector.load %arg13[%c16, %c0_55] : memref<64x512xf32, #tpu.memory_space<vmem>>, vector<8x512xf32>
    %114 = arith.truncf %111 : vector<8x128xf32> to vector<8x128xbf16>
    %cst_56 = arith.constant dense<0.000000e+00> : vector<8x512xf32>
    %115 = tpu.matmul %114, %38, %cst_56 {dimension_numbers = #tpu.dot_dimension_numbers<[1], [0], [0], [1], [0, 0, 1, 1], [], []>} : vector<8x128xbf16>, vector<128x512xbf16>, vector<8x512xf32> -> vector<8x512xf32>
    %116 = arith.addf %113, %115 : vector<8x512xf32>
    %117 = vector.extract_strided_slice %116 {offsets = [0, 0], sizes = [8, 128], strides = [1, 1]} : vector<8x512xf32> to vector<8x128xf32>
    %cst_57 = arith.constant 5.000000e-01 : f32
    %118 = vector.broadcast %cst_57 : f32 to vector<8x128xf32>
    %119 = arith.mulf %118, %117 : vector<8x128xf32>
    %120 = math.tanh %119 : vector<8x128xf32>
    %cst_58 = arith.constant 1.000000e+00 : f32
    %121 = vector.broadcast %cst_58 : f32 to vector<8x128xf32>
    %122 = arith.addf %120, %121 : vector<8x128xf32>
    %cst_59 = arith.constant 5.000000e-01 : f32
    %123 = vector.broadcast %cst_59 : f32 to vector<8x128xf32>
    %124 = arith.mulf %123, %122 : vector<8x128xf32>
    %125 = vector.extract_strided_slice %116 {offsets = [0, 128], sizes = [8, 128], strides = [1, 1]} : vector<8x512xf32> to vector<8x128xf32>
    %cst_60 = arith.constant 5.000000e-01 : f32
    %126 = vector.broadcast %cst_60 : f32 to vector<8x128xf32>
    %127 = arith.mulf %126, %125 : vector<8x128xf32>
    %128 = math.tanh %127 : vector<8x128xf32>
    %cst_61 = arith.constant 1.000000e+00 : f32
    %129 = vector.broadcast %cst_61 : f32 to vector<8x128xf32>
    %130 = arith.addf %128, %129 : vector<8x128xf32>
    %cst_62 = arith.constant 5.000000e-01 : f32
    %131 = vector.broadcast %cst_62 : f32 to vector<8x128xf32>
    %132 = arith.mulf %131, %130 : vector<8x128xf32>
    %133 = vector.extract_strided_slice %116 {offsets = [0, 256], sizes = [8, 128], strides = [1, 1]} : vector<8x512xf32> to vector<8x128xf32>
    %134 = math.tanh %133 : vector<8x128xf32>
    %135 = vector.extract_strided_slice %116 {offsets = [0, 384], sizes = [8, 128], strides = [1, 1]} : vector<8x512xf32> to vector<8x128xf32>
    %cst_63 = arith.constant 5.000000e-01 : f32
    %136 = vector.broadcast %cst_63 : f32 to vector<8x128xf32>
    %137 = arith.mulf %136, %135 : vector<8x128xf32>
    %138 = math.tanh %137 : vector<8x128xf32>
    %cst_64 = arith.constant 1.000000e+00 : f32
    %139 = vector.broadcast %cst_64 : f32 to vector<8x128xf32>
    %140 = arith.addf %138, %139 : vector<8x128xf32>
    %cst_65 = arith.constant 5.000000e-01 : f32
    %141 = vector.broadcast %cst_65 : f32 to vector<8x128xf32>
    %142 = arith.mulf %141, %140 : vector<8x128xf32>
    %143 = arith.mulf %132, %109 : vector<8x128xf32>
    %144 = arith.mulf %124, %134 : vector<8x128xf32>
    %145 = arith.addf %143, %144 : vector<8x128xf32>
    %146 = math.tanh %145 : vector<8x128xf32>
    %147 = arith.mulf %142, %146 : vector<8x128xf32>
    %c0_66 = arith.constant 0 : index
    %c256 = arith.constant 256 : index
    %148 = vector.load %arg10[%c0_66, %c256] : memref<8x1024xf32, #tpu.memory_space<vmem>>, vector<8x128xf32>
    tpu.vector_store %arg10[%c0_66, %c256], %147 {strides = array<i32>} : memref<8x1024xf32, #tpu.memory_space<vmem>>, vector<8x128xf32>,
    %c24 = arith.constant 24 : index
    %c0_67 = arith.constant 0 : index
    %149 = vector.load %arg13[%c24, %c0_67] : memref<64x512xf32, #tpu.memory_space<vmem>>, vector<8x512xf32>
    %150 = arith.truncf %147 : vector<8x128xf32> to vector<8x128xbf16>
    %cst_68 = arith.constant dense<0.000000e+00> : vector<8x512xf32>
    %151 = tpu.matmul %150, %38, %cst_68 {dimension_numbers = #tpu.dot_dimension_numbers<[1], [0], [0], [1], [0, 0, 1, 1], [], []>} : vector<8x128xbf16>, vector<128x512xbf16>, vector<8x512xf32> -> vector<8x512xf32>
    %152 = arith.addf %149, %151 : vector<8x512xf32>
    %153 = vector.extract_strided_slice %152 {offsets = [0, 0], sizes = [8, 128], strides = [1, 1]} : vector<8x512xf32> to vector<8x128xf32>
    %cst_69 = arith.constant 5.000000e-01 : f32
    %154 = vector.broadcast %cst_69 : f32 to vector<8x128xf32>
    %155 = arith.mulf %154, %153 : vector<8x128xf32>
    %156 = math.tanh %155 : vector<8x128xf32>
    %cst_70 = arith.constant 1.000000e+00 : f32
    %157 = vector.broadcast %cst_70 : f32 to vector<8x128xf32>
    %158 = arith.addf %156, %157 : vector<8x128xf32>
    %cst_71 = arith.constant 5.000000e-01 : f32
    %159 = vector.broadcast %cst_71 : f32 to vector<8x128xf32>
    %160 = arith.mulf %159, %158 : vector<8x128xf32>
    %161 = vector.extract_strided_slice %152 {offsets = [0, 128], sizes = [8, 128], strides = [1, 1]} : vector<8x512xf32> to vector<8x128xf32>
    %cst_72 = arith.constant 5.000000e-01 : f32
    %162 = vector.broadcast %cst_72 : f32 to vector<8x128xf32>
    %163 = arith.mulf %162, %161 : vector<8x128xf32>
    %164 = math.tanh %163 : vector<8x128xf32>
    %cst_73 = arith.constant 1.000000e+00 : f32
    %165 = vector.broadcast %cst_73 : f32 to vector<8x128xf32>
    %166 = arith.addf %164, %165 : vector<8x128xf32>
    %cst_74 = arith.constant 5.000000e-01 : f32
    %167 = vector.broadcast %cst_74 : f32 to vector<8x128xf32>
    %168 = arith.mulf %167, %166 : vector<8x128xf32>
    %169 = vector.extract_strided_slice %152 {offsets = [0, 256], sizes = [8, 128], strides = [1, 1]} : vector<8x512xf32> to vector<8x128xf32>
    %170 = math.tanh %169 : vector<8x128xf32>
    %171 = vector.extract_strided_slice %152 {offsets = [0, 384], sizes = [8, 128], strides = [1, 1]} : vector<8x512xf32> to vector<8x128xf32>
    %cst_75 = arith.constant 5.000000e-01 : f32
    %172 = vector.broadcast %cst_75 : f32 to vector<8x128xf32>
    %173 = arith.mulf %172, %171 : vector<8x128xf32>
    %174 = math.tanh %173 : vector<8x128xf32>
    %cst_76 = arith.constant 1.000000e+00 : f32
    %175 = vector.broadcast %cst_76 : f32 to vector<8x128xf32>
    %176 = arith.addf %174, %175 : vector<8x128xf32>
    %cst_77 = arith.constant 5.000000e-01 : f32
    %177 = vector.broadcast %cst_77 : f32 to vector<8x128xf32>
    %178 = arith.mulf %177, %176 : vector<8x128xf32>
    %179 = arith.mulf %168, %145 : vector<8x128xf32>
    %180 = arith.mulf %160, %170 : vector<8x128xf32>
    %181 = arith.addf %179, %180 : vector<8x128xf32>
    %182 = math.tanh %181 : vector<8x128xf32>
    %183 = arith.mulf %178, %182 : vector<8x128xf32>
    %c0_78 = arith.constant 0 : index
    %c384 = arith.constant 384 : index
    %184 = vector.load %arg10[%c0_78, %c384] : memref<8x1024xf32, #tpu.memory_space<vmem>>, vector<8x128xf32>
    tpu.vector_store %arg10[%c0_78, %c384], %183 {strides = array<i32>} : memref<8x1024xf32, #tpu.memory_space<vmem>>, vector<8x128xf32>,
    %c32 = arith.constant 32 : index
    %c0_79 = arith.constant 0 : index
    %185 = vector.load %arg13[%c32, %c0_79] : memref<64x512xf32, #tpu.memory_space<vmem>>, vector<8x512xf32>
    %186 = arith.truncf %183 : vector<8x128xf32> to vector<8x128xbf16>
    %cst_80 = arith.constant dense<0.000000e+00> : vector<8x512xf32>
    %187 = tpu.matmul %186, %38, %cst_80 {dimension_numbers = #tpu.dot_dimension_numbers<[1], [0], [0], [1], [0, 0, 1, 1], [], []>} : vector<8x128xbf16>, vector<128x512xbf16>, vector<8x512xf32> -> vector<8x512xf32>
    %188 = arith.addf %185, %187 : vector<8x512xf32>
    %189 = vector.extract_strided_slice %188 {offsets = [0, 0], sizes = [8, 128], strides = [1, 1]} : vector<8x512xf32> to vector<8x128xf32>
    %cst_81 = arith.constant 5.000000e-01 : f32
    %190 = vector.broadcast %cst_81 : f32 to vector<8x128xf32>
    %191 = arith.mulf %190, %189 : vector<8x128xf32>
    %192 = math.tanh %191 : vector<8x128xf32>
    %cst_82 = arith.constant 1.000000e+00 : f32
    %193 = vector.broadcast %cst_82 : f32 to vector<8x128xf32>
    %194 = arith.addf %192, %193 : vector<8x128xf32>
    %cst_83 = arith.constant 5.000000e-01 : f32
    %195 = vector.broadcast %cst_83 : f32 to vector<8x128xf32>
    %196 = arith.mulf %195, %194 : vector<8x128xf32>
    %197 = vector.extract_strided_slice %188 {offsets = [0, 128], sizes = [8, 128], strides = [1, 1]} : vector<8x512xf32> to vector<8x128xf32>
    %cst_84 = arith.constant 5.000000e-01 : f32
    %198 = vector.broadcast %cst_84 : f32 to vector<8x128xf32>
    %199 = arith.mulf %198, %197 : vector<8x128xf32>
    %200 = math.tanh %199 : vector<8x128xf32>
    %cst_85 = arith.constant 1.000000e+00 : f32
    %201 = vector.broadcast %cst_85 : f32 to vector<8x128xf32>
    %202 = arith.addf %200, %201 : vector<8x128xf32>
    %cst_86 = arith.constant 5.000000e-01 : f32
    %203 = vector.broadcast %cst_86 : f32 to vector<8x128xf32>
    %204 = arith.mulf %203, %202 : vector<8x128xf32>
    %205 = vector.extract_strided_slice %188 {offsets = [0, 256], sizes = [8, 128], strides = [1, 1]} : vector<8x512xf32> to vector<8x128xf32>
    %206 = math.tanh %205 : vector<8x128xf32>
    %207 = vector.extract_strided_slice %188 {offsets = [0, 384], sizes = [8, 128], strides = [1, 1]} : vector<8x512xf32> to vector<8x128xf32>
    %cst_87 = arith.constant 5.000000e-01 : f32
    %208 = vector.broadcast %cst_87 : f32 to vector<8x128xf32>
    %209 = arith.mulf %208, %207 : vector<8x128xf32>
    %210 = math.tanh %209 : vector<8x128xf32>
    %cst_88 = arith.constant 1.000000e+00 : f32
    %211 = vector.broadcast %cst_88 : f32 to vector<8x128xf32>
    %212 = arith.addf %210, %211 : vector<8x128xf32>
    %cst_89 = arith.constant 5.000000e-01 : f32
    %213 = vector.broadcast %cst_89 : f32 to vector<8x128xf32>
    %214 = arith.mulf %213, %212 : vector<8x128xf32>
    %215 = arith.mulf %204, %181 : vector<8x128xf32>
    %216 = arith.mulf %196, %206 : vector<8x128xf32>
    %217 = arith.addf %215, %216 : vector<8x128xf32>
    %218 = math.tanh %217 : vector<8x128xf32>
    %219 = arith.mulf %214, %218 : vector<8x128xf32>
    %c0_90 = arith.constant 0 : index
    %c512 = arith.constant 512 : index
    %220 = vector.load %arg10[%c0_90, %c512] : memref<8x1024xf32, #tpu.memory_space<vmem>>, vector<8x128xf32>
    tpu.vector_store %arg10[%c0_90, %c512], %219 {strides = array<i32>} : memref<8x1024xf32, #tpu.memory_space<vmem>>, vector<8x128xf32>,
    %c40 = arith.constant 40 : index
    %c0_91 = arith.constant 0 : index
    %221 = vector.load %arg13[%c40, %c0_91] : memref<64x512xf32, #tpu.memory_space<vmem>>, vector<8x512xf32>
    %222 = arith.truncf %219 : vector<8x128xf32> to vector<8x128xbf16>
    %cst_92 = arith.constant dense<0.000000e+00> : vector<8x512xf32>
    %223 = tpu.matmul %222, %38, %cst_92 {dimension_numbers = #tpu.dot_dimension_numbers<[1], [0], [0], [1], [0, 0, 1, 1], [], []>} : vector<8x128xbf16>, vector<128x512xbf16>, vector<8x512xf32> -> vector<8x512xf32>
    %224 = arith.addf %221, %223 : vector<8x512xf32>
    %225 = vector.extract_strided_slice %224 {offsets = [0, 0], sizes = [8, 128], strides = [1, 1]} : vector<8x512xf32> to vector<8x128xf32>
    %cst_93 = arith.constant 5.000000e-01 : f32
    %226 = vector.broadcast %cst_93 : f32 to vector<8x128xf32>
    %227 = arith.mulf %226, %225 : vector<8x128xf32>
    %228 = math.tanh %227 : vector<8x128xf32>
    %cst_94 = arith.constant 1.000000e+00 : f32
    %229 = vector.broadcast %cst_94 : f32 to vector<8x128xf32>
    %230 = arith.addf %228, %229 : vector<8x128xf32>
    %cst_95 = arith.constant 5.000000e-01 : f32
    %231 = vector.broadcast %cst_95 : f32 to vector<8x128xf32>
    %232 = arith.mulf %231, %230 : vector<8x128xf32>
    %233 = vector.extract_strided_slice %224 {offsets = [0, 128], sizes = [8, 128], strides = [1, 1]} : vector<8x512xf32> to vector<8x128xf32>
    %cst_96 = arith.constant 5.000000e-01 : f32
    %234 = vector.broadcast %cst_96 : f32 to vector<8x128xf32>
    %235 = arith.mulf %234, %233 : vector<8x128xf32>
    %236 = math.tanh %235 : vector<8x128xf32>
    %cst_97 = arith.constant 1.000000e+00 : f32
    %237 = vector.broadcast %cst_97 : f32 to vector<8x128xf32>
    %238 = arith.addf %236, %237 : vector<8x128xf32>
    %cst_98 = arith.constant 5.000000e-01 : f32
    %239 = vector.broadcast %cst_98 : f32 to vector<8x128xf32>
    %240 = arith.mulf %239, %238 : vector<8x128xf32>
    %241 = vector.extract_strided_slice %224 {offsets = [0, 256], sizes = [8, 128], strides = [1, 1]} : vector<8x512xf32> to vector<8x128xf32>
    %242 = math.tanh %241 : vector<8x128xf32>
    %243 = vector.extract_strided_slice %224 {offsets = [0, 384], sizes = [8, 128], strides = [1, 1]} : vector<8x512xf32> to vector<8x128xf32>
    %cst_99 = arith.constant 5.000000e-01 : f32
    %244 = vector.broadcast %cst_99 : f32 to vector<8x128xf32>
    %245 = arith.mulf %244, %243 : vector<8x128xf32>
    %246 = math.tanh %245 : vector<8x128xf32>
    %cst_100 = arith.constant 1.000000e+00 : f32
    %247 = vector.broadcast %cst_100 : f32 to vector<8x128xf32>
    %248 = arith.addf %246, %247 : vector<8x128xf32>
    %cst_101 = arith.constant 5.000000e-01 : f32
    %249 = vector.broadcast %cst_101 : f32 to vector<8x128xf32>
    %250 = arith.mulf %249, %248 : vector<8x128xf32>
    %251 = arith.mulf %240, %217 : vector<8x128xf32>
    %252 = arith.mulf %232, %242 : vector<8x128xf32>
    %253 = arith.addf %251, %252 : vector<8x128xf32>
    %254 = math.tanh %253 : vector<8x128xf32>
    %255 = arith.mulf %250, %254 : vector<8x128xf32>
    %c0_102 = arith.constant 0 : index
    %c640 = arith.constant 640 : index
    %256 = vector.load %arg10[%c0_102, %c640] : memref<8x1024xf32, #tpu.memory_space<vmem>>, vector<8x128xf32>
    tpu.vector_store %arg10[%c0_102, %c640], %255 {strides = array<i32>} : memref<8x1024xf32, #tpu.memory_space<vmem>>, vector<8x128xf32>,
    %c48 = arith.constant 48 : index
    %c0_103 = arith.constant 0 : index
    %257 = vector.load %arg13[%c48, %c0_103] : memref<64x512xf32, #tpu.memory_space<vmem>>, vector<8x512xf32>
    %258 = arith.truncf %255 : vector<8x128xf32> to vector<8x128xbf16>
    %cst_104 = arith.constant dense<0.000000e+00> : vector<8x512xf32>
    %259 = tpu.matmul %258, %38, %cst_104 {dimension_numbers = #tpu.dot_dimension_numbers<[1], [0], [0], [1], [0, 0, 1, 1], [], []>} : vector<8x128xbf16>, vector<128x512xbf16>, vector<8x512xf32> -> vector<8x512xf32>
    %260 = arith.addf %257, %259 : vector<8x512xf32>
    %261 = vector.extract_strided_slice %260 {offsets = [0, 0], sizes = [8, 128], strides = [1, 1]} : vector<8x512xf32> to vector<8x128xf32>
    %cst_105 = arith.constant 5.000000e-01 : f32
    %262 = vector.broadcast %cst_105 : f32 to vector<8x128xf32>
    %263 = arith.mulf %262, %261 : vector<8x128xf32>
    %264 = math.tanh %263 : vector<8x128xf32>
    %cst_106 = arith.constant 1.000000e+00 : f32
    %265 = vector.broadcast %cst_106 : f32 to vector<8x128xf32>
    %266 = arith.addf %264, %265 : vector<8x128xf32>
    %cst_107 = arith.constant 5.000000e-01 : f32
    %267 = vector.broadcast %cst_107 : f32 to vector<8x128xf32>
    %268 = arith.mulf %267, %266 : vector<8x128xf32>
    %269 = vector.extract_strided_slice %260 {offsets = [0, 128], sizes = [8, 128], strides = [1, 1]} : vector<8x512xf32> to vector<8x128xf32>
    %cst_108 = arith.constant 5.000000e-01 : f32
    %270 = vector.broadcast %cst_108 : f32 to vector<8x128xf32>
    %271 = arith.mulf %270, %269 : vector<8x128xf32>
    %272 = math.tanh %271 : vector<8x128xf32>
    %cst_109 = arith.constant 1.000000e+00 : f32
    %273 = vector.broadcast %cst_109 : f32 to vector<8x128xf32>
    %274 = arith.addf %272, %273 : vector<8x128xf32>
    %cst_110 = arith.constant 5.000000e-01 : f32
    %275 = vector.broadcast %cst_110 : f32 to vector<8x128xf32>
    %276 = arith.mulf %275, %274 : vector<8x128xf32>
    %277 = vector.extract_strided_slice %260 {offsets = [0, 256], sizes = [8, 128], strides = [1, 1]} : vector<8x512xf32> to vector<8x128xf32>
    %278 = math.tanh %277 : vector<8x128xf32>
    %279 = vector.extract_strided_slice %260 {offsets = [0, 384], sizes = [8, 128], strides = [1, 1]} : vector<8x512xf32> to vector<8x128xf32>
    %cst_111 = arith.constant 5.000000e-01 : f32
    %280 = vector.broadcast %cst_111 : f32 to vector<8x128xf32>
    %281 = arith.mulf %280, %279 : vector<8x128xf32>
    %282 = math.tanh %281 : vector<8x128xf32>
    %cst_112 = arith.constant 1.000000e+00 : f32
    %283 = vector.broadcast %cst_112 : f32 to vector<8x128xf32>
    %284 = arith.addf %282, %283 : vector<8x128xf32>
    %cst_113 = arith.constant 5.000000e-01 : f32
    %285 = vector.broadcast %cst_113 : f32 to vector<8x128xf32>
    %286 = arith.mulf %285, %284 : vector<8x128xf32>
    %287 = arith.mulf %276, %253 : vector<8x128xf32>
    %288 = arith.mulf %268, %278 : vector<8x128xf32>
    %289 = arith.addf %287, %288 : vector<8x128xf32>
    %290 = math.tanh %289 : vector<8x128xf32>
    %291 = arith.mulf %286, %290 : vector<8x128xf32>
    %c0_114 = arith.constant 0 : index
    %c768 = arith.constant 768 : index
    %292 = vector.load %arg10[%c0_114, %c768] : memref<8x1024xf32, #tpu.memory_space<vmem>>, vector<8x128xf32>
    tpu.vector_store %arg10[%c0_114, %c768], %291 {strides = array<i32>} : memref<8x1024xf32, #tpu.memory_space<vmem>>, vector<8x128xf32>,
    %c56_115 = arith.constant 56 : index
    %c0_116 = arith.constant 0 : index
    %293 = vector.load %arg13[%c56_115, %c0_116] : memref<64x512xf32, #tpu.memory_space<vmem>>, vector<8x512xf32>
    %294 = arith.truncf %291 : vector<8x128xf32> to vector<8x128xbf16>
    %cst_117 = arith.constant dense<0.000000e+00> : vector<8x512xf32>
    %295 = tpu.matmul %294, %38, %cst_117 {dimension_numbers = #tpu.dot_dimension_numbers<[1], [0], [0], [1], [0, 0, 1, 1], [], []>} : vector<8x128xbf16>, vector<128x512xbf16>, vector<8x512xf32> -> vector<8x512xf32>
    %296 = arith.addf %293, %295 : vector<8x512xf32>
    %297 = vector.extract_strided_slice %296 {offsets = [0, 0], sizes = [8, 128], strides = [1, 1]} : vector<8x512xf32> to vector<8x128xf32>
    %cst_118 = arith.constant 5.000000e-01 : f32
    %298 = vector.broadcast %cst_118 : f32 to vector<8x128xf32>
    %299 = arith.mulf %298, %297 : vector<8x128xf32>
    %300 = math.tanh %299 : vector<8x128xf32>
    %cst_119 = arith.constant 1.000000e+00 : f32
    %301 = vector.broadcast %cst_119 : f32 to vector<8x128xf32>
    %302 = arith.addf %300, %301 : vector<8x128xf32>
    %cst_120 = arith.constant 5.000000e-01 : f32
    %303 = vector.broadcast %cst_120 : f32 to vector<8x128xf32>
    %304 = arith.mulf %303, %302 : vector<8x128xf32>
    %305 = vector.extract_strided_slice %296 {offsets = [0, 128], sizes = [8, 128], strides = [1, 1]} : vector<8x512xf32> to vector<8x128xf32>
    %cst_121 = arith.constant 5.000000e-01 : f32
    %306 = vector.broadcast %cst_121 : f32 to vector<8x128xf32>
    %307 = arith.mulf %306, %305 : vector<8x128xf32>
    %308 = math.tanh %307 : vector<8x128xf32>
    %cst_122 = arith.constant 1.000000e+00 : f32
    %309 = vector.broadcast %cst_122 : f32 to vector<8x128xf32>
    %310 = arith.addf %308, %309 : vector<8x128xf32>
    %cst_123 = arith.constant 5.000000e-01 : f32
    %311 = vector.broadcast %cst_123 : f32 to vector<8x128xf32>
    %312 = arith.mulf %311, %310 : vector<8x128xf32>
    %313 = vector.extract_strided_slice %296 {offsets = [0, 256], sizes = [8, 128], strides = [1, 1]} : vector<8x512xf32> to vector<8x128xf32>
    %314 = math.tanh %313 : vector<8x128xf32>
    %315 = vector.extract_strided_slice %296 {offsets = [0, 384], sizes = [8, 128], strides = [1, 1]} : vector<8x512xf32> to vector<8x128xf32>
    %cst_124 = arith.constant 5.000000e-01 : f32
    %316 = vector.broadcast %cst_124 : f32 to vector<8x128xf32>
    %317 = arith.mulf %316, %315 : vector<8x128xf32>
    %318 = math.tanh %317 : vector<8x128xf32>
    %cst_125 = arith.constant 1.000000e+00 : f32
    %319 = vector.broadcast %cst_125 : f32 to vector<8x128xf32>
    %320 = arith.addf %318, %319 : vector<8x128xf32>
    %cst_126 = arith.constant 5.000000e-01 : f32
    %321 = vector.broadcast %cst_126 : f32 to vector<8x128xf32>
    %322 = arith.mulf %321, %320 : vector<8x128xf32>
    %323 = arith.mulf %312, %289 : vector<8x128xf32>
    %324 = arith.mulf %304, %314 : vector<8x128xf32>
    %325 = arith.addf %323, %324 : vector<8x128xf32>
    %326 = math.tanh %325 : vector<8x128xf32>
    %327 = arith.mulf %322, %326 : vector<8x128xf32>
    %c0_127 = arith.constant 0 : index
    %c896 = arith.constant 896 : index
    %328 = vector.load %arg10[%c0_127, %c896] : memref<8x1024xf32, #tpu.memory_space<vmem>>, vector<8x128xf32>
    tpu.vector_store %arg10[%c0_127, %c896], %327 {strides = array<i32>} : memref<8x1024xf32, #tpu.memory_space<vmem>>, vector<8x128xf32>,
    %c0_128 = arith.constant 0 : index
    %c0_129 = arith.constant 0 : index
    %329 = vector.load %arg11[%c0_128, %c0_129] : memref<8x128xf32, #tpu.memory_space<vmem>>, vector<8x128xf32>
    tpu.vector_store %arg11[%c0_128, %c0_129], %327 {strides = array<i32>} : memref<8x128xf32, #tpu.memory_space<vmem>>, vector<8x128xf32>,
    %c0_130 = arith.constant 0 : index
    %c0_131 = arith.constant 0 : index
    %330 = vector.load %arg12[%c0_130, %c0_131] : memref<8x128xf32, #tpu.memory_space<vmem>>, vector<8x128xf32>
    tpu.vector_store %arg12[%c0_130, %c0_131], %325 {strides = array<i32>} : memref<8x128xf32, #tpu.memory_space<vmem>>, vector<8x128xf32>,
    return
  }
}

</mosaic_0001>

<llo_original>
// kernel: tpu_custom_call.1
$region0: #{tpu_custom_call.1}
  #allocation0 [shape = 'u32[]', space=smem, size = 0x4, offset = 0x4, fixed_abs, tag = 'smem constant byte address 0x4 - core index']
  #allocation1 [shape = 'u32[144,128]{1,0:T(1,128)}', space=vmem, size = 0x12000, scoped, tag = 'internal scratch']
  #allocation2 [shape = 'f32[64,512]{1,0:T(8,128)}', space=vmem, size = 0x20000, scoped, tag = 'scratch operand']
  %s0 = inlined_call_operand.vmem [shape: f32[64,4], index: 0, kind: input, shape index: {}]
  %s1 = inlined_call_operand.vmem [shape: s32[64,2], index: 1, kind: input, shape index: {}]
  %s2 = inlined_call_operand.vmem [shape: f32[7,4], index: 2, kind: input, shape index: {}]
  %s3 = inlined_call_operand.vmem [shape: f32[2,4], index: 3, kind: input, shape index: {}]
  %s4 = inlined_call_operand.vmem [shape: f32[4,512], index: 4, kind: input, shape index: {}]
  %s5 = inlined_call_operand.vmem [shape: f32[7,512], index: 5, kind: input, shape index: {}]
  %s6 = inlined_call_operand.vmem [shape: f32[2,512], index: 6, kind: input, shape index: {}]
  %s7 = inlined_call_operand.hbm [shape: f32[128,512], index: 7, kind: input, shape index: {}]
  %s8 = inlined_call_operand.vmem [shape: f32[1,512], index: 8, kind: input, shape index: {}]
  %s9 = inlined_call_operand.hbm [shape: f32[8,128], index: 9, kind: output, shape index: {0}]
  %s10 = inlined_call_operand.hbm [shape: f32[8,1024], index: 10, kind: output, shape index: {1}]
  %s11 = inlined_call_operand.hbm [shape: f32[8,128], index: 11, kind: output, shape index: {2}]
  %s12 = inlined_call_operand.hbm [shape: f32[8,128], index: 12, kind: output, shape index: {3}]
  %13 = xla_tuple %s9, %s10, %s11, %s12
  %s14 = sld [smem:[#allocation0]]
  $region74: #{tpu_custom_call.1} parent=0
    _
  %s16 = ssub.s32 1, %s14
  %s17 = scalar_select 0, %s16, %s14
  $region1: #{tpu_custom_call.1} parent=0
    #allocation3 [shape = 'u8[262144]{0}', space=vmem, size = 0x40000, scoped, tag = 'input window, operand 7, single buffered']
    #allocation4 [shape = 's32[1]{0}', space=sflag, size = 0x4, scoped, tag = 'scoped memory for tpu_custom_call.1']
    #allocation5 [shape = 's32[1]{0}', space=sflag, size = 0x4, scoped, tag = 'scoped memory for tpu_custom_call.1']
    #allocation6 [shape = 'u8[4096]{0}', space=vmem, size = 0x1000, scoped, tag = 'output window, operand 0, single buffered']
    #allocation7 [shape = 'u8[32768]{0}', space=vmem, size = 0x8000, scoped, tag = 'output window, operand 1, single buffered']
    #allocation8 [shape = 's32[1]{0}', space=sflag, size = 0x4, scoped, tag = 'scoped memory for tpu_custom_call.1']
    #allocation9 [shape = 'u8[4096]{0}', space=vmem, size = 0x1000, scoped, tag = 'output window, operand 2, single buffered']
    #allocation10 [shape = 'u8[4096]{0}', space=vmem, size = 0x1000, scoped, tag = 'output window, operand 3, single buffered']
    #allocation11 [shape = 's32[1]{0}', space=sflag, size = 0x4, scoped, tag = 'scoped memory for tpu_custom_call.1']
    %18 = vsyncpa [#allocation4], 0
    %19 = vsyncpa [#allocation5], 0
    %20 = vsyncpa [#allocation8], 0
    %21 = vsyncpa [#allocation11], 0
    // Predicated region
    $region2: #{tpu_custom_call.1} parent=1 // pred_check
      _
    $region3: #{tpu_custom_call.1} parent=1 // pred_check_branch
      %23 = sbr.rel (0) target = $region5
    $region4: #{tpu_custom_call.1} parent=1 // pred_region
      _
    $region5: #{tpu_custom_call.1} parent=1 // pred_fallthru
      _
    // Predicated region
    $region6: #{tpu_custom_call.1} parent=1 // pred_check
      _
    $region7: #{tpu_custom_call.1} parent=1 // pred_check_branch
      %25 = sbr.rel (0) target = $region9
    $region8: #{tpu_custom_call.1} parent=1 // pred_region
      _
    $region9: #{tpu_custom_call.1} parent=1 // pred_fallthru
      _
    // Predicated region
    $region10: #{tpu_custom_call.1} parent=1 // pred_check
      _
    $region11: #{tpu_custom_call.1} parent=1 // pred_check_branch
      %27 = sbr.rel (0) target = $region13
    $region12: #{tpu_custom_call.1} parent=1 // pred_region
      _
    $region13: #{tpu_custom_call.1} parent=1 // pred_fallthru
      _
    // Predicated region
    $region14: #{tpu_custom_call.1} parent=1 // pred_check
      _
    $region15: #{tpu_custom_call.1} parent=1 // pred_check_branch
      %29 = sbr.rel (0) target = $region17
    $region16: #{tpu_custom_call.1} parent=1 // pred_region
      _
    $region17: #{tpu_custom_call.1} parent=1 // pred_fallthru
      _
    // Predicated region
    $region18: #{tpu_custom_call.1} parent=1 // pred_check
      _
    $region19: #{tpu_custom_call.1} parent=1 // pred_check_branch
      %31 = sbr.rel (0) target = $region21
    $region20: #{tpu_custom_call.1} parent=1 // pred_region
      _
    $region21: #{tpu_custom_call.1} parent=1 // pred_fallthru
      _
    // Predicated region
    $region22: #{tpu_custom_call.1} parent=1 // pred_check
      _
    $region23: #{tpu_custom_call.1} parent=1 // pred_check_branch
      %33 = sbr.rel (0) target = $region25
    $region24: #{tpu_custom_call.1} parent=1 // pred_region
      _
    $region25: #{tpu_custom_call.1} parent=1 // pred_fallthru
      _
    // Predicated region
    $region26: #{tpu_custom_call.1} parent=1 // pred_check
      _
    $region27: #{tpu_custom_call.1} parent=1 // pred_check_branch
      %35 = sbr.rel (0) target = $region29
    $region28: #{tpu_custom_call.1} parent=1 // pred_region
      _
    $region29: #{tpu_custom_call.1} parent=1 // pred_fallthru
      _
    // Predicated region
    $region30: #{tpu_custom_call.1} parent=1 // pred_check
      _
    $region31: #{tpu_custom_call.1} parent=1 // pred_check_branch
      %37 = sbr.rel (0) target = $region33
    $region32: #{tpu_custom_call.1} parent=1 // pred_region
      %s39 = ssub.s32 8192, 8192
      %40 = vsyncadd [#allocation4], %s39
      %s41 = sshll.u32 [#allocation3], 4
      %s42 = int_to_ptr.vmem [resolvable:$true] %s41
      %47 = dma.hbm_to_vmem [thread:$0]  %s7, 8192, %s42, [#allocation4], 512, 512, 32
    $region33: #{tpu_custom_call.1} parent=1 // pred_fallthru
      _
    // Predicated region
    $region34: #{tpu_custom_call.1} parent=1 // pred_check
      _
    $region35: #{tpu_custom_call.1} parent=1 // pred_check_branch
      %49 = sbr.rel (0) target = $region37
    $region36: #{tpu_custom_call.1} parent=1 // pred_region
      _
    $region37: #{tpu_custom_call.1} parent=1 // pred_fallthru
      _
    // Predicated region
    $region38: #{tpu_custom_call.1} parent=1 // pred_check
      _
    $region39: #{tpu_custom_call.1} parent=1 // pred_check_branch
      %51 = sbr.rel (0) target = $region41
    $region40: #{tpu_custom_call.1} parent=1 // pred_region
      %52 = dma.done [#allocation4], 8192
    $region41: #{tpu_custom_call.1} parent=1 // pred_fallthru
      _
    %v54 = vld [vmem:[%s1] sm:$0xff]
    %v55 = vld [vmem:[%s1 + $0x8] sm:$0xff]
    %v56 = vld [vmem:[%s1 + $0x10] sm:$0xff]
    %v57 = vld [vmem:[%s1 + $0x18] sm:$0xff]
    %v58 = vld [vmem:[%s1 + $0x20] sm:$0xff]
    %v59 = vld [vmem:[%s1 + $0x28] sm:$0xff]
    %v60 = vld [vmem:[%s1 + $0x30] sm:$0xff]
    %v61 = vld [vmem:[%s1 + $0x38] sm:$0xff]
    %v62 = vlaneseq
    %v63 = vand.u32 %v62, 127
    %64 = vset.pattern.permute.xlu0 0
    %65 = vperm.xlu0 %64, %v54
    %v66 = vpop.permute.xlu0 %65
    %67 = vset.pattern.permute.xlu0 0
    %68 = vperm.xlu0 %67, %v55
    %v69 = vpop.permute.xlu0 %68
    %70 = vset.pattern.permute.xlu0 0
    %71 = vperm.xlu0 %70, %v56
    %v72 = vpop.permute.xlu0 %71
    %73 = vset.pattern.permute.xlu0 0
    %74 = vperm.xlu0 %73, %v57
    %v75 = vpop.permute.xlu0 %74
    %76 = vset.pattern.permute.xlu0 0
    %77 = vperm.xlu0 %76, %v58
    %v78 = vpop.permute.xlu0 %77
    %79 = vset.pattern.permute.xlu0 0
    %80 = vperm.xlu0 %79, %v59
    %v81 = vpop.permute.xlu0 %80
    %82 = vset.pattern.permute.xlu0 0
    %83 = vperm.xlu0 %82, %v60
    %v84 = vpop.permute.xlu0 %83
    %85 = vset.pattern.permute.xlu0 0
    %86 = vperm.xlu0 %85, %v61
    %v87 = vpop.permute.xlu0 %86
    %vm88 = vcmp.eq.s32.totalorder %v66, %v63
    %vm89 = vcmp.eq.s32.totalorder %v69, %v63
    %vm90 = vcmp.eq.s32.totalorder %v72, %v63
    %vm91 = vcmp.eq.s32.totalorder %v75, %v63
    %vm92 = vcmp.eq.s32.totalorder %v78, %v63
    %vm93 = vcmp.eq.s32.totalorder %v81, %v63
    %vm94 = vcmp.eq.s32.totalorder %v84, %v63
    %vm95 = vcmp.eq.s32.totalorder %v87, %v63
    %v96 = vsel %vm88, 1, 0
    %v97 = vsel %vm89, 1, 0
    %v98 = vsel %vm90, 1, 0
    %v99 = vsel %vm91, 1, 0
    %v100 = vsel %vm92, 1, 0
    %v101 = vsel %vm93, 1, 0
    %v102 = vsel %vm94, 1, 0
    %v103 = vsel %vm95, 1, 0
    %v104 = vcvt.s32.f32 %v96
    %v105 = vcvt.s32.f32 %v97
    %v106 = vcvt.s32.f32 %v98
    %v107 = vcvt.s32.f32 %v99
    %v108 = vcvt.s32.f32 %v100
    %v109 = vcvt.s32.f32 %v101
    %v110 = vcvt.s32.f32 %v102
    %v111 = vcvt.s32.f32 %v103
    %112 = vset.pattern.permute.xlu0 1
    %113 = vperm.xlu0 %112, %v54
    %v114 = vpop.permute.xlu0 %113
    %115 = vset.pattern.permute.xlu0 1
    %116 = vperm.xlu0 %115, %v55
    %v117 = vpop.permute.xlu0 %116
    %118 = vset.pattern.permute.xlu0 1
    %119 = vperm.xlu0 %118, %v56
    %v120 = vpop.permute.xlu0 %119
    %121 = vset.pattern.permute.xlu0 1
    %122 = vperm.xlu0 %121, %v57
    %v123 = vpop.permute.xlu0 %122
    %124 = vset.pattern.permute.xlu0 1
    %125 = vperm.xlu0 %124, %v58
    %v126 = vpop.permute.xlu0 %125
    %127 = vset.pattern.permute.xlu0 1
    %128 = vperm.xlu0 %127, %v59
    %v129 = vpop.permute.xlu0 %128
    %130 = vset.pattern.permute.xlu0 1
    %131 = vperm.xlu0 %130, %v60
    %v132 = vpop.permute.xlu0 %131
    %133 = vset.pattern.permute.xlu0 1
    %134 = vperm.xlu0 %133, %v61
    %v135 = vpop.permute.xlu0 %134
    %vm136 = vcmp.eq.s32.totalorder %v114, %v63
    %vm137 = vcmp.eq.s32.totalorder %v117, %v63
    %vm138 = vcmp.eq.s32.totalorder %v120, %v63
    %vm139 = vcmp.eq.s32.totalorder %v123, %v63
    %vm140 = vcmp.eq.s32.totalorder %v126, %v63
    %vm141 = vcmp.eq.s32.totalorder %v129, %v63
    %vm142 = vcmp.eq.s32.totalorder %v132, %v63
    %vm143 = vcmp.eq.s32.totalorder %v135, %v63
    %v144 = vsel %vm136, 1, 0
    %v145 = vsel %vm137, 1, 0
    %v146 = vsel %vm138, 1, 0
    %v147 = vsel %vm139, 1, 0
    %v148 = vsel %vm140, 1, 0
    %v149 = vsel %vm141, 1, 0
    %v150 = vsel %vm142, 1, 0
    %v151 = vsel %vm143, 1, 0
    %v152 = vcvt.s32.f32 %v144
    %v153 = vcvt.s32.f32 %v145
    %v154 = vcvt.s32.f32 %v146
    %v155 = vcvt.s32.f32 %v147
    %v156 = vcvt.s32.f32 %v148
    %v157 = vcvt.s32.f32 %v149
    %v158 = vcvt.s32.f32 %v150
    %v159 = vcvt.s32.f32 %v151
    %v160 = vld [vmem:[%s0] sm:$0xff]
    %v161 = vld [vmem:[%s0 + $0x8] sm:$0xff]
    %v162 = vld [vmem:[%s0 + $0x10] sm:$0xff]
    %v163 = vld [vmem:[%s0 + $0x18] sm:$0xff]
    %v164 = vld [vmem:[%s0 + $0x20] sm:$0xff]
    %v165 = vld [vmem:[%s0 + $0x28] sm:$0xff]
    %v166 = vld [vmem:[%s0 + $0x30] sm:$0xff]
    %v167 = vld [vmem:[%s0 + $0x38] sm:$0xff]
    %v168 = vld [vmem:[%s4] sm:$0xff]
    %v169 = vld [vmem:[%s4 + $0x8] sm:$0xff]
    %v170 = vld [vmem:[%s5] sm:$0x7f]
    %v171 = vld [vmem:[%s5 + $0x8] sm:$0x7f]
    %v172 = vld [vmem:[%s5 + $0x10] sm:$0x7f]
    %v173 = vld [vmem:[%s5 + $0x18] sm:$0x7f]
    %vm174 = vcmask 56320
    %v176 = vsel %vm174, %v104, 0
    %v179 = vsel %vm174, %v105, 0
    %v182 = vsel %vm174, %v106, 0
    %v185 = vsel %vm174, %v107, 0
    %v188 = vsel %vm174, %v108, 0
    %v191 = vsel %vm174, %v109, 0
    %v194 = vsel %vm174, %v110, 0
    %v197 = vsel %vm174, %v111, 0
    %vm199 = vcmask 1046528
    %v201 = vsel %vm199, %v170, 0
    %v204 = vsel %vm199, %v171, 0
    %v207 = vsel %vm199, %v172, 0
    %v210 = vsel %vm199, %v173, 0
    %212 = vmatprep.subr.mxu0 0.0
    %213 = vmatpush1.msra.mxu0 0.0
    %214 = vmatprep.subr.mxu0 0.0
    %215 = vmatpush1.msra.mxu0 0.0
    %216 = vmatprep.subr.mxu0 0.0
    %217 = vmatpush1.msra.mxu0 0.0
    %218 = vmatprep.subr.mxu0 0.0
    %219 = vmatpush1.msra.mxu0 0.0
    %220 = vmatprep.subr.mxu0 0.0
    %221 = vmatpush1.msra.mxu0 0.0
    %222 = vmatprep.subr.mxu0 0.0
    %223 = vmatpush1.msra.mxu0 0.0
    %224 = vmatprep.subr.mxu0 0.0
    %225 = vmatpush1.msra.mxu0 0.0
    %226 = vmatprep.subr.mxu0 0.0
    %227 = vmatpush1.msra.mxu0 0.0
    %228 = vmatprep.subr.mxu0 0.0
    %229 = vmatpush1.msra.mxu0 0.0
    %230 = vmatprep.subr.mxu0 0.0
    %231 = vmatpush1.msra.mxu0 0.0
    %232 = vmatprep.subr.mxu0 0.0
    %233 = vmatpush1.msra.mxu0 0.0
    %234 = vmatprep.subr.mxu0 0.0
    %235 = vmatpush1.msra.mxu0 0.0
    %236 = vmatprep.subr.mxu0 0.0
    %237 = vmatpush1.msra.mxu0 0.0
    %238 = vmatprep.subr.mxu0 0.0
    %239 = vmatpush1.msra.mxu0 0.0
    %240 = vmatprep.subr.mxu0 0.0
    %241 = vmatpush1.msra.mxu0 0.0
    %242 = vmatprep.subr.mxu0 %v204
    %243 = vmatpush1.msra.mxu0 %v201
    %244 = vmatprep.subr.mxu0 0.0
    %245 = vmatpush2.msra.mxu0 0.0
    %246 = vmatprep.subr.mxu0 0.0
    %247 = vmatpush2.msra.mxu0 0.0
    %248 = vmatprep.subr.mxu0 0.0
    %249 = vmatpush2.msra.mxu0 0.0
    %250 = vmatprep.subr.mxu0 0.0
    %251 = vmatpush2.msra.mxu0 0.0
    %252 = vmatprep.subr.mxu0 0.0
    %253 = vmatpush2.msra.mxu0 0.0
    %254 = vmatprep.subr.mxu0 0.0
    %255 = vmatpush2.msra.mxu0 0.0
    %256 = vmatprep.subr.mxu0 0.0
    %257 = vmatpush2.msra.mxu0 0.0
    %258 = vmatprep.subr.mxu0 0.0
    %259 = vmatpush2.msra.mxu0 0.0
    %260 = vmatprep.subr.mxu0 0.0
    %261 = vmatpush2.msra.mxu0 0.0
    %262 = vmatprep.subr.mxu0 0.0
    %263 = vmatpush2.msra.mxu0 0.0
    %264 = vmatprep.subr.mxu0 0.0
    %265 = vmatpush2.msra.mxu0 0.0
    %266 = vmatprep.subr.mxu0 0.0
    %267 = vmatpush2.msra.mxu0 0.0
    %268 = vmatprep.subr.mxu0 0.0
    %269 = vmatpush2.msra.mxu0 0.0
    %270 = vmatprep.subr.mxu0 0.0
    %271 = vmatpush2.msra.mxu0 0.0
    %272 = vmatprep.subr.mxu0 0.0
    %273 = vmatpush2.msra.mxu0 0.0
    %274 = vmatprep.subr.mxu0 0.0
    %275 = vmatpush2.msra.mxu0 0.0
    %276 = vmatprep.mubr.f32.mxu0 0.0
    %277 = vmatmul.mubr.f32.gmra.mxu0 %v176
    %v278 = vpop.f32.mrf.mxu0
    %v279 = vadd.f32 0.0, %v278
    %v280 = vpop.f32.mrf.mxu0
    %v281 = vadd.f32 0.0, %v280
    %282 = vmatprep.mubr.f32.mxu0 0.0
    %283 = vmatmul.mubr.f32.gmra.mxu0 %v179
    %v284 = vpop.f32.mrf.mxu0
    %v285 = vadd.f32 0.0, %v284
    %v286 = vpop.f32.mrf.mxu0
    %v287 = vadd.f32 0.0, %v286
    %288 = vmatprep.mubr.f32.mxu0 0.0
    %289 = vmatmul.mubr.f32.gmra.mxu0 %v182
    %v290 = vpop.f32.mrf.mxu0
    %v291 = vadd.f32 0.0, %v290
    %v292 = vpop.f32.mrf.mxu0
    %v293 = vadd.f32 0.0, %v292
    %294 = vmatprep.mubr.f32.mxu0 0.0
    %295 = vmatmul.mubr.f32.gmra.mxu0 %v185
    %v296 = vpop.f32.mrf.mxu0
    %v297 = vadd.f32 0.0, %v296
    %v298 = vpop.f32.mrf.mxu0
    %v299 = vadd.f32 0.0, %v298
    %300 = vmatprep.mubr.f32.mxu0 0.0
    %301 = vmatmul.mubr.f32.gmra.mxu0 %v188
    %v302 = vpop.f32.mrf.mxu0
    %v303 = vadd.f32 0.0, %v302
    %v304 = vpop.f32.mrf.mxu0
    %v305 = vadd.f32 0.0, %v304
    %306 = vmatprep.mubr.f32.mxu0 0.0
    %307 = vmatmul.mubr.f32.gmra.mxu0 %v191
    %v308 = vpop.f32.mrf.mxu0
    %v309 = vadd.f32 0.0, %v308
    %v310 = vpop.f32.mrf.mxu0
    %v311 = vadd.f32 0.0, %v310
    %312 = vmatprep.mubr.f32.mxu0 0.0
    %313 = vmatmul.mubr.f32.gmra.mxu0 %v194
    %v314 = vpop.f32.mrf.mxu0
    %v315 = vadd.f32 0.0, %v314
    %v316 = vpop.f32.mrf.mxu0
    %v317 = vadd.f32 0.0, %v316
    %318 = vmatprep.mubr.f32.mxu0 0.0
    %319 = vmatmul.mubr.f32.gmra.mxu0 %v197
    %v320 = vpop.f32.mrf.mxu0
    %v321 = vadd.f32 0.0, %v320
    %v322 = vpop.f32.mrf.mxu0
    %v323 = vadd.f32 0.0, %v322
    %324 = vdwg.mxu0
    %325 = vmatprep.subr.mxu0 0.0
    %326 = vmatpush1.msra.mxu0 0.0
    %327 = vmatprep.subr.mxu0 0.0
    %328 = vmatpush1.msra.mxu0 0.0
    %329 = vmatprep.subr.mxu0 0.0
    %330 = vmatpush1.msra.mxu0 0.0
    %331 = vmatprep.subr.mxu0 0.0
    %332 = vmatpush1.msra.mxu0 0.0
    %333 = vmatprep.subr.mxu0 0.0
    %334 = vmatpush1.msra.mxu0 0.0
    %335 = vmatprep.subr.mxu0 0.0
    %336 = vmatpush1.msra.mxu0 0.0
    %337 = vmatprep.subr.mxu0 0.0
    %338 = vmatpush1.msra.mxu0 0.0
    %339 = vmatprep.subr.mxu0 0.0
    %340 = vmatpush1.msra.mxu0 0.0
    %341 = vmatprep.subr.mxu0 0.0
    %342 = vmatpush1.msra.mxu0 0.0
    %343 = vmatprep.subr.mxu0 0.0
    %344 = vmatpush1.msra.mxu0 0.0
    %345 = vmatprep.subr.mxu0 0.0
    %346 = vmatpush1.msra.mxu0 0.0
    %347 = vmatprep.subr.mxu0 0.0
    %348 = vmatpush1.msra.mxu0 0.0
    %349 = vmatprep.subr.mxu0 0.0
    %350 = vmatpush1.msra.mxu0 0.0
    %351 = vmatprep.subr.mxu0 0.0
    %352 = vmatpush1.msra.mxu0 0.0
    %353 = vmatprep.subr.mxu0 0.0
    %354 = vmatpush1.msra.mxu0 0.0
    %355 = vmatprep.subr.mxu0 %v210
    %356 = vmatpush1.msra.mxu0 %v207
    %357 = vmatprep.subr.mxu0 0.0
    %358 = vmatpush2.msra.mxu0 0.0
    %359 = vmatprep.subr.mxu0 0.0
    %360 = vmatpush2.msra.mxu0 0.0
    %361 = vmatprep.subr.mxu0 0.0
    %362 = vmatpush2.msra.mxu0 0.0
    %363 = vmatprep.subr.mxu0 0.0
    %364 = vmatpush2.msra.mxu0 0.0
    %365 = vmatprep.subr.mxu0 0.0
    %366 = vmatpush2.msra.mxu0 0.0
    %367 = vmatprep.subr.mxu0 0.0
    %368 = vmatpush2.msra.mxu0 0.0
    %369 = vmatprep.subr.mxu0 0.0
    %370 = vmatpush2.msra.mxu0 0.0
    %371 = vmatprep.subr.mxu0 0.0
    %372 = vmatpush2.msra.mxu0 0.0
    %373 = vmatprep.subr.mxu0 0.0
    %374 = vmatpush2.msra.mxu0 0.0
    %375 = vmatprep.subr.mxu0 0.0
    %376 = vmatpush2.msra.mxu0 0.0
    %377 = vmatprep.subr.mxu0 0.0
    %378 = vmatpush2.msra.mxu0 0.0
    %379 = vmatprep.subr.mxu0 0.0
    %380 = vmatpush2.msra.mxu0 0.0
    %381 = vmatprep.subr.mxu0 0.0
    %382 = vmatpush2.msra.mxu0 0.0
    %383 = vmatprep.subr.mxu0 0.0
    %384 = vmatpush2.msra.mxu0 0.0
    %385 = vmatprep.subr.mxu0 0.0
    %386 = vmatpush2.msra.mxu0 0.0
    %387 = vmatprep.subr.mxu0 0.0
    %388 = vmatpush2.msra.mxu0 0.0
    %389 = vmatprep.mubr.f32.mxu0 0.0
    %390 = vmatmul.mubr.f32.gmra.mxu0 %v176
    %v391 = vpop.f32.mrf.mxu0
    %v392 = vadd.f32 0.0, %v391
    %v393 = vpop.f32.mrf.mxu0
    %v394 = vadd.f32 0.0, %v393
    %395 = vmatprep.mubr.f32.mxu0 0.0
    %396 = vmatmul.mubr.f32.gmra.mxu0 %v179
    %v397 = vpop.f32.mrf.mxu0
    %v398 = vadd.f32 0.0, %v397
    %v399 = vpop.f32.mrf.mxu0
    %v400 = vadd.f32 0.0, %v399
    %401 = vmatprep.mubr.f32.mxu0 0.0
    %402 = vmatmul.mubr.f32.gmra.mxu0 %v182
    %v403 = vpop.f32.mrf.mxu0
    %v404 = vadd.f32 0.0, %v403
    %v405 = vpop.f32.mrf.mxu0
    %v406 = vadd.f32 0.0, %v405
    %407 = vmatprep.mubr.f32.mxu0 0.0
    %408 = vmatmul.mubr.f32.gmra.mxu0 %v185
    %v409 = vpop.f32.mrf.mxu0
    %v410 = vadd.f32 0.0, %v409
    %v411 = vpop.f32.mrf.mxu0
    %v412 = vadd.f32 0.0, %v411
    %413 = vmatprep.mubr.f32.mxu0 0.0
    %414 = vmatmul.mubr.f32.gmra.mxu0 %v188
    %v415 = vpop.f32.mrf.mxu0
    %v416 = vadd.f32 0.0, %v415
    %v417 = vpop.f32.mrf.mxu0
    %v418 = vadd.f32 0.0, %v417
    %419 = vmatprep.mubr.f32.mxu0 0.0
    %420 = vmatmul.mubr.f32.gmra.mxu0 %v191
    %v421 = vpop.f32.mrf.mxu0
    %v422 = vadd.f32 0.0, %v421
    %v423 = vpop.f32.mrf.mxu0
    %v424 = vadd.f32 0.0, %v423
    %425 = vmatprep.mubr.f32.mxu0 0.0
    %426 = vmatmul.mubr.f32.gmra.mxu0 %v194
    %v427 = vpop.f32.mrf.mxu0
    %v428 = vadd.f32 0.0, %v427
    %v429 = vpop.f32.mrf.mxu0
    %v430 = vadd.f32 0.0, %v429
    %431 = vmatprep.mubr.f32.mxu0 0.0
    %432 = vmatmul.mubr.f32.gmra.mxu0 %v197
    %v433 = vpop.f32.mrf.mxu0
    %v434 = vadd.f32 0.0, %v433
    %v435 = vpop.f32.mrf.mxu0
    %v436 = vadd.f32 0.0, %v435
    %437 = vdwg.mxu0
    %v440 = vcombine.high %v168, %v168
    %v441 = vcombine.high %v169, %v169
    %vm442 = vcmask 31744
    %v444 = vsel %vm442, %v160, 0
    %v447 = vsel %vm442, %v161, 0
    %v450 = vsel %vm442, %v162, 0
    %v453 = vsel %vm442, %v163, 0
    %v456 = vsel %vm442, %v164, 0
    %v459 = vsel %vm442, %v165, 0
    %v462 = vsel %vm442, %v166, 0
    %v465 = vsel %vm442, %v167, 0
    %vm467 = vcmask 1043456
    %v468 = vsel %vm467, %v168, 0
    %v470 = vsel %vm467, %v440, 0
    %v472 = vsel %vm467, %v169, 0
    %v474 = vsel %vm467, %v441, 0
    %476 = vmatprep.subr.mxu0 0.0
    %477 = vmatpush1.msra.mxu0 0.0
    %478 = vmatprep.subr.mxu0 0.0
    %479 = vmatpush1.msra.mxu0 0.0
    %480 = vmatprep.subr.mxu0 0.0
    %481 = vmatpush1.msra.mxu0 0.0
    %482 = vmatprep.subr.mxu0 0.0
    %483 = vmatpush1.msra.mxu0 0.0
    %484 = vmatprep.subr.mxu0 0.0
    %485 = vmatpush1.msra.mxu0 0.0
    %486 = vmatprep.subr.mxu0 0.0
    %487 = vmatpush1.msra.mxu0 0.0
    %488 = vmatprep.subr.mxu0 0.0
    %489 = vmatpush1.msra.mxu0 0.0
    %490 = vmatprep.subr.mxu0 0.0
    %491 = vmatpush1.msra.mxu0 0.0
    %492 = vmatprep.subr.mxu0 0.0
    %493 = vmatpush1.msra.mxu0 0.0
    %494 = vmatprep.subr.mxu0 0.0
    %495 = vmatpush1.msra.mxu0 0.0
    %496 = vmatprep.subr.mxu0 0.0
    %497 = vmatpush1.msra.mxu0 0.0
    %498 = vmatprep.subr.mxu0 0.0
    %499 = vmatpush1.msra.mxu0 0.0
    %500 = vmatprep.subr.mxu0 0.0
    %501 = vmatpush1.msra.mxu0 0.0
    %502 = vmatprep.subr.mxu0 0.0
    %503 = vmatpush1.msra.mxu0 0.0
    %504 = vmatprep.subr.mxu0 0.0
    %505 = vmatpush1.msra.mxu0 0.0
    %506 = vmatprep.subr.mxu0 %v470
    %507 = vmatpush1.msra.mxu0 %v468
    %508 = vmatprep.subr.mxu0 0.0
    %509 = vmatpush2.msra.mxu0 0.0
    %510 = vmatprep.subr.mxu0 0.0
    %511 = vmatpush2.msra.mxu0 0.0
    %512 = vmatprep.subr.mxu0 0.0
    %513 = vmatpush2.msra.mxu0 0.0
    %514 = vmatprep.subr.mxu0 0.0
    %515 = vmatpush2.msra.mxu0 0.0
    %516 = vmatprep.subr.mxu0 0.0
    %517 = vmatpush2.msra.mxu0 0.0
    %518 = vmatprep.subr.mxu0 0.0
    %519 = vmatpush2.msra.mxu0 0.0
    %520 = vmatprep.subr.mxu0 0.0
    %521 = vmatpush2.msra.mxu0 0.0
    %522 = vmatprep.subr.mxu0 0.0
    %523 = vmatpush2.msra.mxu0 0.0
    %524 = vmatprep.subr.mxu0 0.0
    %525 = vmatpush2.msra.mxu0 0.0
    %526 = vmatprep.subr.mxu0 0.0
    %527 = vmatpush2.msra.mxu0 0.0
    %528 = vmatprep.subr.mxu0 0.0
    %529 = vmatpush2.msra.mxu0 0.0
    %530 = vmatprep.subr.mxu0 0.0
    %531 = vmatpush2.msra.mxu0 0.0
    %532 = vmatprep.subr.mxu0 0.0
    %533 = vmatpush2.msra.mxu0 0.0
    %534 = vmatprep.subr.mxu0 0.0
    %535 = vmatpush2.msra.mxu0 0.0
    %536 = vmatprep.subr.mxu0 0.0
    %537 = vmatpush2.msra.mxu0 0.0
    %538 = vmatprep.subr.mxu0 0.0
    %539 = vmatpush2.msra.mxu0 0.0
    %540 = vmatprep.mubr.f32.mxu0 0.0
    %541 = vmatmul.mubr.f32.gmra.mxu0 %v444
    %v542 = vpop.f32.mrf.mxu0
    %v543 = vadd.f32 %v279, %v542
    %v544 = vpop.f32.mrf.mxu0
    %v545 = vadd.f32 %v281, %v544
    %546 = vmatprep.mubr.f32.mxu0 0.0
    %547 = vmatmul.mubr.f32.gmra.mxu0 %v447
    %v548 = vpop.f32.mrf.mxu0
    %v549 = vadd.f32 %v285, %v548
    %v550 = vpop.f32.mrf.mxu0
    %v551 = vadd.f32 %v287, %v550
    %552 = vmatprep.mubr.f32.mxu0 0.0
    %553 = vmatmul.mubr.f32.gmra.mxu0 %v450
    %v554 = vpop.f32.mrf.mxu0
    %v555 = vadd.f32 %v291, %v554
    %v556 = vpop.f32.mrf.mxu0
    %v557 = vadd.f32 %v293, %v556
    %558 = vmatprep.mubr.f32.mxu0 0.0
    %559 = vmatmul.mubr.f32.gmra.mxu0 %v453
    %v560 = vpop.f32.mrf.mxu0
    %v561 = vadd.f32 %v297, %v560
    %v562 = vpop.f32.mrf.mxu0
    %v563 = vadd.f32 %v299, %v562
    %564 = vmatprep.mubr.f32.mxu0 0.0
    %565 = vmatmul.mubr.f32.gmra.mxu0 %v456
    %v566 = vpop.f32.mrf.mxu0
    %v567 = vadd.f32 %v303, %v566
    %v568 = vpop.f32.mrf.mxu0
    %v569 = vadd.f32 %v305, %v568
    %570 = vmatprep.mubr.f32.mxu0 0.0
    %571 = vmatmul.mubr.f32.gmra.mxu0 %v459
    %v572 = vpop.f32.mrf.mxu0
    %v573 = vadd.f32 %v309, %v572
    %v574 = vpop.f32.mrf.mxu0
    %v575 = vadd.f32 %v311, %v574
    %576 = vmatprep.mubr.f32.mxu0 0.0
    %577 = vmatmul.mubr.f32.gmra.mxu0 %v462
    %v578 = vpop.f32.mrf.mxu0
    %v579 = vadd.f32 %v315, %v578
    %v580 = vpop.f32.mrf.mxu0
    %v581 = vadd.f32 %v317, %v580
    %582 = vmatprep.mubr.f32.mxu0 0.0
    %583 = vmatmul.mubr.f32.gmra.mxu0 %v465
    %v584 = vpop.f32.mrf.mxu0
    %v585 = vadd.f32 %v321, %v584
    %v586 = vpop.f32.mrf.mxu0
    %v587 = vadd.f32 %v323, %v586
    %588 = vdwg.mxu0
    %589 = vmatprep.subr.mxu0 0.0
    %590 = vmatpush1.msra.mxu0 0.0
    %591 = vmatprep.subr.mxu0 0.0
    %592 = vmatpush1.msra.mxu0 0.0
    %593 = vmatprep.subr.mxu0 0.0
    %594 = vmatpush1.msra.mxu0 0.0
    %595 = vmatprep.subr.mxu0 0.0
    %596 = vmatpush1.msra.mxu0 0.0
    %597 = vmatprep.subr.mxu0 0.0
    %598 = vmatpush1.msra.mxu0 0.0
    %599 = vmatprep.subr.mxu0 0.0
    %600 = vmatpush1.msra.mxu0 0.0
    %601 = vmatprep.subr.mxu0 0.0
    %602 = vmatpush1.msra.mxu0 0.0
    %603 = vmatprep.subr.mxu0 0.0
    %604 = vmatpush1.msra.mxu0 0.0
    %605 = vmatprep.subr.mxu0 0.0
    %606 = vmatpush1.msra.mxu0 0.0
    %607 = vmatprep.subr.mxu0 0.0
    %608 = vmatpush1.msra.mxu0 0.0
    %609 = vmatprep.subr.mxu0 0.0
    %610 = vmatpush1.msra.mxu0 0.0
    %611 = vmatprep.subr.mxu0 0.0
    %612 = vmatpush1.msra.mxu0 0.0
    %613 = vmatprep.subr.mxu0 0.0
    %614 = vmatpush1.msra.mxu0 0.0
    %615 = vmatprep.subr.mxu0 0.0
    %616 = vmatpush1.msra.mxu0 0.0
    %617 = vmatprep.subr.mxu0 0.0
    %618 = vmatpush1.msra.mxu0 0.0
    %619 = vmatprep.subr.mxu0 %v474
    %620 = vmatpush1.msra.mxu0 %v472
    %621 = vmatprep.subr.mxu0 0.0
    %622 = vmatpush2.msra.mxu0 0.0
    %623 = vmatprep.subr.mxu0 0.0
    %624 = vmatpush2.msra.mxu0 0.0
    %625 = vmatprep.subr.mxu0 0.0
    %626 = vmatpush2.msra.mxu0 0.0
    %627 = vmatprep.subr.mxu0 0.0
    %628 = vmatpush2.msra.mxu0 0.0
    %629 = vmatprep.subr.mxu0 0.0
    %630 = vmatpush2.msra.mxu0 0.0
    %631 = vmatprep.subr.mxu0 0.0
    %632 = vmatpush2.msra.mxu0 0.0
    %633 = vmatprep.subr.mxu0 0.0
    %634 = vmatpush2.msra.mxu0 0.0
    %635 = vmatprep.subr.mxu0 0.0
    %636 = vmatpush2.msra.mxu0 0.0
    %637 = vmatprep.subr.mxu0 0.0
    %638 = vmatpush2.msra.mxu0 0.0
    %639 = vmatprep.subr.mxu0 0.0
    %640 = vmatpush2.msra.mxu0 0.0
    %641 = vmatprep.subr.mxu0 0.0
    %642 = vmatpush2.msra.mxu0 0.0
    %643 = vmatprep.subr.mxu0 0.0
    %644 = vmatpush2.msra.mxu0 0.0
    %645 = vmatprep.subr.mxu0 0.0
    %646 = vmatpush2.msra.mxu0 0.0
    %647 = vmatprep.subr.mxu0 0.0
    %648 = vmatpush2.msra.mxu0 0.0
    %649 = vmatprep.subr.mxu0 0.0
    %650 = vmatpush2.msra.mxu0 0.0
    %651 = vmatprep.subr.mxu0 0.0
    %652 = vmatpush2.msra.mxu0 0.0
    %653 = vmatprep.mubr.f32.mxu0 0.0
    %654 = vmatmul.mubr.f32.gmra.mxu0 %v444
    %v655 = vpop.f32.mrf.mxu0
    %v656 = vadd.f32 %v392, %v655
    %v657 = vpop.f32.mrf.mxu0
    %v658 = vadd.f32 %v394, %v657
    %659 = vmatprep.mubr.f32.mxu0 0.0
    %660 = vmatmul.mubr.f32.gmra.mxu0 %v447
    %v661 = vpop.f32.mrf.mxu0
    %v662 = vadd.f32 %v398, %v661
    %v663 = vpop.f32.mrf.mxu0
    %v664 = vadd.f32 %v400, %v663
    %665 = vmatprep.mubr.f32.mxu0 0.0
    %666 = vmatmul.mubr.f32.gmra.mxu0 %v450
    %v667 = vpop.f32.mrf.mxu0
    %v668 = vadd.f32 %v404, %v667
    %v669 = vpop.f32.mrf.mxu0
    %v670 = vadd.f32 %v406, %v669
    %671 = vmatprep.mubr.f32.mxu0 0.0
    %672 = vmatmul.mubr.f32.gmra.mxu0 %v453
    %v673 = vpop.f32.mrf.mxu0
    %v674 = vadd.f32 %v410, %v673
    %v675 = vpop.f32.mrf.mxu0
    %v676 = vadd.f32 %v412, %v675
    %677 = vmatprep.mubr.f32.mxu0 0.0
    %678 = vmatmul.mubr.f32.gmra.mxu0 %v456
    %v679 = vpop.f32.mrf.mxu0
    %v680 = vadd.f32 %v416, %v679
    %v681 = vpop.f32.mrf.mxu0
    %v682 = vadd.f32 %v418, %v681
    %683 = vmatprep.mubr.f32.mxu0 0.0
    %684 = vmatmul.mubr.f32.gmra.mxu0 %v459
    %v685 = vpop.f32.mrf.mxu0
    %v686 = vadd.f32 %v422, %v685
    %v687 = vpop.f32.mrf.mxu0
    %v688 = vadd.f32 %v424, %v687
    %689 = vmatprep.mubr.f32.mxu0 0.0
    %690 = vmatmul.mubr.f32.gmra.mxu0 %v462
    %v691 = vpop.f32.mrf.mxu0
    %v692 = vadd.f32 %v428, %v691
    %v693 = vpop.f32.mrf.mxu0
    %v694 = vadd.f32 %v430, %v693
    %695 = vmatprep.mubr.f32.mxu0 0.0
    %696 = vmatmul.mubr.f32.gmra.mxu0 %v465
    %v697 = vpop.f32.mrf.mxu0
    %v698 = vadd.f32 %v434, %v697
    %v699 = vpop.f32.mrf.mxu0
    %v700 = vadd.f32 %v436, %v699
    %701 = vdwg.mxu0
    %v702 = vld [vmem:[%s6] sm:$0xff]
    %v704 = vcombine.high %v702, %v702
    %v706 = vunpack.c.l.s4 1983009808
    %v707 = vunpack.c.0.s8 %v706
    %v708 = vlaneseq
    %v709 = vshrl.u32 %v708, 7
    %v710 = vsub.s32 %v707, %v709
    %v711 = vrot.slane %v702, %v710
    %v713 = vunpack.c.l.s4 1983009808
    %v714 = vunpack.c.0.s8 %v713
    %v715 = vlaneseq
    %v716 = vshrl.u32 %v715, 7
    %v717 = vsub.s32 %v714, %v716
    %v718 = vrot.slane %v704, %v717
    %v719 = vcombine.high %v711, %v711
    %v720 = vcombine.high %v718, %v718
    %vm721 = vcmask 15360
    %v723 = vsel %vm721, %v152, 0
    %v726 = vsel %vm721, %v153, 0
    %v729 = vsel %vm721, %v154, 0
    %v732 = vsel %vm721, %v155, 0
    %v735 = vsel %vm721, %v156, 0
    %v738 = vsel %vm721, %v157, 0
    %v741 = vsel %vm721, %v158, 0
    %v744 = vsel %vm721, %v159, 0
    %vm746 = vcmask 1041408
    %v747 = vsel %vm746, %v711, 0
    %v749 = vsel %vm746, %v719, 0
    %v751 = vsel %vm746, %v718, 0
    %v753 = vsel %vm746, %v720, 0
    %755 = vmatprep.subr.mxu0 0.0
    %756 = vmatpush1.msra.mxu0 0.0
    %757 = vmatprep.subr.mxu0 0.0
    %758 = vmatpush1.msra.mxu0 0.0
    %759 = vmatprep.subr.mxu0 0.0
    %760 = vmatpush1.msra.mxu0 0.0
    %761 = vmatprep.subr.mxu0 0.0
    %762 = vmatpush1.msra.mxu0 0.0
    %763 = vmatprep.subr.mxu0 0.0
    %764 = vmatpush1.msra.mxu0 0.0
    %765 = vmatprep.subr.mxu0 0.0
    %766 = vmatpush1.msra.mxu0 0.0
    %767 = vmatprep.subr.mxu0 0.0
    %768 = vmatpush1.msra.mxu0 0.0
    %769 = vmatprep.subr.mxu0 0.0
    %770 = vmatpush1.msra.mxu0 0.0
    %771 = vmatprep.subr.mxu0 0.0
    %772 = vmatpush1.msra.mxu0 0.0
    %773 = vmatprep.subr.mxu0 0.0
    %774 = vmatpush1.msra.mxu0 0.0
    %775 = vmatprep.subr.mxu0 0.0
    %776 = vmatpush1.msra.mxu0 0.0
    %777 = vmatprep.subr.mxu0 0.0
    %778 = vmatpush1.msra.mxu0 0.0
    %779 = vmatprep.subr.mxu0 0.0
    %780 = vmatpush1.msra.mxu0 0.0
    %781 = vmatprep.subr.mxu0 0.0
    %782 = vmatpush1.msra.mxu0 0.0
    %783 = vmatprep.subr.mxu0 0.0
    %784 = vmatpush1.msra.mxu0 0.0
    %785 = vmatprep.subr.mxu0 %v749
    %786 = vmatpush1.msra.mxu0 %v747
    %787 = vmatprep.subr.mxu0 0.0
    %788 = vmatpush2.msra.mxu0 0.0
    %789 = vmatprep.subr.mxu0 0.0
    %790 = vmatpush2.msra.mxu0 0.0
    %791 = vmatprep.subr.mxu0 0.0
    %792 = vmatpush2.msra.mxu0 0.0
    %793 = vmatprep.subr.mxu0 0.0
    %794 = vmatpush2.msra.mxu0 0.0
    %795 = vmatprep.subr.mxu0 0.0
    %796 = vmatpush2.msra.mxu0 0.0
    %797 = vmatprep.subr.mxu0 0.0
    %798 = vmatpush2.msra.mxu0 0.0
    %799 = vmatprep.subr.mxu0 0.0
    %800 = vmatpush2.msra.mxu0 0.0
    %801 = vmatprep.subr.mxu0 0.0
    %802 = vmatpush2.msra.mxu0 0.0
    %803 = vmatprep.subr.mxu0 0.0
    %804 = vmatpush2.msra.mxu0 0.0
    %805 = vmatprep.subr.mxu0 0.0
    %806 = vmatpush2.msra.mxu0 0.0
    %807 = vmatprep.subr.mxu0 0.0
    %808 = vmatpush2.msra.mxu0 0.0
    %809 = vmatprep.subr.mxu0 0.0
    %810 = vmatpush2.msra.mxu0 0.0
    %811 = vmatprep.subr.mxu0 0.0
    %812 = vmatpush2.msra.mxu0 0.0
    %813 = vmatprep.subr.mxu0 0.0
    %814 = vmatpush2.msra.mxu0 0.0
    %815 = vmatprep.subr.mxu0 0.0
    %816 = vmatpush2.msra.mxu0 0.0
    %817 = vmatprep.subr.mxu0 0.0
    %818 = vmatpush2.msra.mxu0 0.0
    %819 = vmatprep.mubr.f32.mxu0 0.0
    %820 = vmatmul.mubr.f32.gmra.mxu0 %v723
    %v821 = vpop.f32.mrf.mxu0
    %v822 = vadd.f32 0.0, %v821
    %v823 = vpop.f32.mrf.mxu0
    %v824 = vadd.f32 0.0, %v823
    %825 = vmatprep.mubr.f32.mxu0 0.0
    %826 = vmatmul.mubr.f32.gmra.mxu0 %v726
    %v827 = vpop.f32.mrf.mxu0
    %v828 = vadd.f32 0.0, %v827
    %v829 = vpop.f32.mrf.mxu0
    %v830 = vadd.f32 0.0, %v829
    %831 = vmatprep.mubr.f32.mxu0 0.0
    %832 = vmatmul.mubr.f32.gmra.mxu0 %v729
    %v833 = vpop.f32.mrf.mxu0
    %v834 = vadd.f32 0.0, %v833
    %v835 = vpop.f32.mrf.mxu0
    %v836 = vadd.f32 0.0, %v835
    %837 = vmatprep.mubr.f32.mxu0 0.0
    %838 = vmatmul.mubr.f32.gmra.mxu0 %v732
    %v839 = vpop.f32.mrf.mxu0
    %v840 = vadd.f32 0.0, %v839
    %v841 = vpop.f32.mrf.mxu0
    %v842 = vadd.f32 0.0, %v841
    %843 = vmatprep.mubr.f32.mxu0 0.0
    %844 = vmatmul.mubr.f32.gmra.mxu0 %v735
    %v845 = vpop.f32.mrf.mxu0
    %v846 = vadd.f32 0.0, %v845
    %v847 = vpop.f32.mrf.mxu0
    %v848 = vadd.f32 0.0, %v847
    %849 = vmatprep.mubr.f32.mxu0 0.0
    %850 = vmatmul.mubr.f32.gmra.mxu0 %v738
    %v851 = vpop.f32.mrf.mxu0
    %v852 = vadd.f32 0.0, %v851
    %v853 = vpop.f32.mrf.mxu0
    %v854 = vadd.f32 0.0, %v853
    %855 = vmatprep.mubr.f32.mxu0 0.0
    %856 = vmatmul.mubr.f32.gmra.mxu0 %v741
    %v857 = vpop.f32.mrf.mxu0
    %v858 = vadd.f32 0.0, %v857
    %v859 = vpop.f32.mrf.mxu0
    %v860 = vadd.f32 0.0, %v859
    %861 = vmatprep.mubr.f32.mxu0 0.0
    %862 = vmatmul.mubr.f32.gmra.mxu0 %v744
    %v863 = vpop.f32.mrf.mxu0
    %v864 = vadd.f32 0.0, %v863
    %v865 = vpop.f32.mrf.mxu0
    %v866 = vadd.f32 0.0, %v865
    %867 = vdwg.mxu0
    %868 = vmatprep.subr.mxu0 0.0
    %869 = vmatpush1.msra.mxu0 0.0
    %870 = vmatprep.subr.mxu0 0.0
    %871 = vmatpush1.msra.mxu0 0.0
    %872 = vmatprep.subr.mxu0 0.0
    %873 = vmatpush1.msra.mxu0 0.0
    %874 = vmatprep.subr.mxu0 0.0
    %875 = vmatpush1.msra.mxu0 0.0
    %876 = vmatprep.subr.mxu0 0.0
    %877 = vmatpush1.msra.mxu0 0.0
    %878 = vmatprep.subr.mxu0 0.0
    %879 = vmatpush1.msra.mxu0 0.0
    %880 = vmatprep.subr.mxu0 0.0
    %881 = vmatpush1.msra.mxu0 0.0
    %882 = vmatprep.subr.mxu0 0.0
    %883 = vmatpush1.msra.mxu0 0.0
    %884 = vmatprep.subr.mxu0 0.0
    %885 = vmatpush1.msra.mxu0 0.0
    %886 = vmatprep.subr.mxu0 0.0
    %887 = vmatpush1.msra.mxu0 0.0
    %888 = vmatprep.subr.mxu0 0.0
    %889 = vmatpush1.msra.mxu0 0.0
    %890 = vmatprep.subr.mxu0 0.0
    %891 = vmatpush1.msra.mxu0 0.0
    %892 = vmatprep.subr.mxu0 0.0
    %893 = vmatpush1.msra.mxu0 0.0
    %894 = vmatprep.subr.mxu0 0.0
    %895 = vmatpush1.msra.mxu0 0.0
    %896 = vmatprep.subr.mxu0 0.0
    %897 = vmatpush1.msra.mxu0 0.0
    %898 = vmatprep.subr.mxu0 %v753
    %899 = vmatpush1.msra.mxu0 %v751
    %900 = vmatprep.subr.mxu0 0.0
    %901 = vmatpush2.msra.mxu0 0.0
    %902 = vmatprep.subr.mxu0 0.0
    %903 = vmatpush2.msra.mxu0 0.0
    %904 = vmatprep.subr.mxu0 0.0
    %905 = vmatpush2.msra.mxu0 0.0
    %906 = vmatprep.subr.mxu0 0.0
    %907 = vmatpush2.msra.mxu0 0.0
    %908 = vmatprep.subr.mxu0 0.0
    %909 = vmatpush2.msra.mxu0 0.0
    %910 = vmatprep.subr.mxu0 0.0
    %911 = vmatpush2.msra.mxu0 0.0
    %912 = vmatprep.subr.mxu0 0.0
    %913 = vmatpush2.msra.mxu0 0.0
    %914 = vmatprep.subr.mxu0 0.0
    %915 = vmatpush2.msra.mxu0 0.0
    %916 = vmatprep.subr.mxu0 0.0
    %917 = vmatpush2.msra.mxu0 0.0
    %918 = vmatprep.subr.mxu0 0.0
    %919 = vmatpush2.msra.mxu0 0.0
    %920 = vmatprep.subr.mxu0 0.0
    %921 = vmatpush2.msra.mxu0 0.0
    %922 = vmatprep.subr.mxu0 0.0
    %923 = vmatpush2.msra.mxu0 0.0
    %924 = vmatprep.subr.mxu0 0.0
    %925 = vmatpush2.msra.mxu0 0.0
    %926 = vmatprep.subr.mxu0 0.0
    %927 = vmatpush2.msra.mxu0 0.0
    %928 = vmatprep.subr.mxu0 0.0
    %929 = vmatpush2.msra.mxu0 0.0
    %930 = vmatprep.subr.mxu0 0.0
    %931 = vmatpush2.msra.mxu0 0.0
    %932 = vmatprep.mubr.f32.mxu0 0.0
    %933 = vmatmul.mubr.f32.gmra.mxu0 %v723
    %v934 = vpop.f32.mrf.mxu0
    %v935 = vadd.f32 0.0, %v934
    %v936 = vpop.f32.mrf.mxu0
    %v937 = vadd.f32 0.0, %v936
    %938 = vmatprep.mubr.f32.mxu0 0.0
    %939 = vmatmul.mubr.f32.gmra.mxu0 %v726
    %v940 = vpop.f32.mrf.mxu0
    %v941 = vadd.f32 0.0, %v940
    %v942 = vpop.f32.mrf.mxu0
    %v943 = vadd.f32 0.0, %v942
    %944 = vmatprep.mubr.f32.mxu0 0.0
    %945 = vmatmul.mubr.f32.gmra.mxu0 %v729
    %v946 = vpop.f32.mrf.mxu0
    %v947 = vadd.f32 0.0, %v946
    %v948 = vpop.f32.mrf.mxu0
    %v949 = vadd.f32 0.0, %v948
    %950 = vmatprep.mubr.f32.mxu0 0.0
    %951 = vmatmul.mubr.f32.gmra.mxu0 %v732
    %v952 = vpop.f32.mrf.mxu0
    %v953 = vadd.f32 0.0, %v952
    %v954 = vpop.f32.mrf.mxu0
    %v955 = vadd.f32 0.0, %v954
    %956 = vmatprep.mubr.f32.mxu0 0.0
    %957 = vmatmul.mubr.f32.gmra.mxu0 %v735
    %v958 = vpop.f32.mrf.mxu0
    %v959 = vadd.f32 0.0, %v958
    %v960 = vpop.f32.mrf.mxu0
    %v961 = vadd.f32 0.0, %v960
    %962 = vmatprep.mubr.f32.mxu0 0.0
    %963 = vmatmul.mubr.f32.gmra.mxu0 %v738
    %v964 = vpop.f32.mrf.mxu0
    %v965 = vadd.f32 0.0, %v964
    %v966 = vpop.f32.mrf.mxu0
    %v967 = vadd.f32 0.0, %v966
    %968 = vmatprep.mubr.f32.mxu0 0.0
    %969 = vmatmul.mubr.f32.gmra.mxu0 %v741
    %v970 = vpop.f32.mrf.mxu0
    %v971 = vadd.f32 0.0, %v970
    %v972 = vpop.f32.mrf.mxu0
    %v973 = vadd.f32 0.0, %v972
    %974 = vmatprep.mubr.f32.mxu0 0.0
    %975 = vmatmul.mubr.f32.gmra.mxu0 %v744
    %v976 = vpop.f32.mrf.mxu0
    %v977 = vadd.f32 0.0, %v976
    %v978 = vpop.f32.mrf.mxu0
    %v979 = vadd.f32 0.0, %v978
    %980 = vdwg.mxu0
    %v981 = vadd.f32 %v543, %v822
    %v982 = vadd.f32 %v545, %v824
    %v983 = vadd.f32 %v656, %v935
    %v984 = vadd.f32 %v658, %v937
    %v985 = vadd.f32 %v549, %v828
    %v986 = vadd.f32 %v551, %v830
    %v987 = vadd.f32 %v662, %v941
    %v988 = vadd.f32 %v664, %v943
    %v989 = vadd.f32 %v555, %v834
    %v990 = vadd.f32 %v557, %v836
    %v991 = vadd.f32 %v668, %v947
    %v992 = vadd.f32 %v670, %v949
    %v993 = vadd.f32 %v561, %v840
    %v994 = vadd.f32 %v563, %v842
    %v995 = vadd.f32 %v674, %v953
    %v996 = vadd.f32 %v676, %v955
    %v997 = vadd.f32 %v567, %v846
    %v998 = vadd.f32 %v569, %v848
    %v999 = vadd.f32 %v680, %v959
    %v1000 = vadd.f32 %v682, %v961
    %v1001 = vadd.f32 %v573, %v852
    %v1002 = vadd.f32 %v575, %v854
    %v1003 = vadd.f32 %v686, %v965
    %v1004 = vadd.f32 %v688, %v967
    %v1005 = vadd.f32 %v579, %v858
    %v1006 = vadd.f32 %v581, %v860
    %v1007 = vadd.f32 %v692, %v971
    %v1008 = vadd.f32 %v694, %v973
    %v1009 = vadd.f32 %v585, %v864
    %v1010 = vadd.f32 %v587, %v866
    %v1011 = vadd.f32 %v698, %v977
    %v1012 = vadd.f32 %v700, %v979
    %v1013 = vld [vmem:[%s8] sm:$0xf]
    %v1015 = vlaneseq
    %v1016 = vshrl.u32 %v1015, 7
    %v1017 = vsub.s32 0, %v1016
    %v1018 = vrot.slane %v1013, %v1017
    %v1019 = vlaneseq
    %v1020 = vshrl.u32 %v1019, 7
    %v1021 = vsub.s32 1, %v1020
    %v1022 = vrot.slane %v1013, %v1021
    %v1023 = vlaneseq
    %v1024 = vshrl.u32 %v1023, 7
    %v1025 = vsub.s32 2, %v1024
    %v1026 = vrot.slane %v1013, %v1025
    %v1027 = vlaneseq
    %v1028 = vshrl.u32 %v1027, 7
    %v1029 = vsub.s32 3, %v1028
    %v1030 = vrot.slane %v1013, %v1029
    %v1035 = vadd.f32 %v981, %v1018
    %v1036 = vadd.f32 %v982, %v1022
    %v1037 = vadd.f32 %v983, %v1026
    %v1038 = vadd.f32 %v984, %v1030
    %v1039 = vadd.f32 %v985, %v1018
    %v1040 = vadd.f32 %v986, %v1022
    %v1041 = vadd.f32 %v987, %v1026
    %v1042 = vadd.f32 %v988, %v1030
    %v1043 = vadd.f32 %v989, %v1018
    %v1044 = vadd.f32 %v990, %v1022
    %v1045 = vadd.f32 %v991, %v1026
    %v1046 = vadd.f32 %v992, %v1030
    %v1047 = vadd.f32 %v993, %v1018
    %v1048 = vadd.f32 %v994, %v1022
    %v1049 = vadd.f32 %v995, %v1026
    %v1050 = vadd.f32 %v996, %v1030
    %v1051 = vadd.f32 %v997, %v1018
    %v1052 = vadd.f32 %v998, %v1022
    %v1053 = vadd.f32 %v999, %v1026
    %v1054 = vadd.f32 %v1000, %v1030
    %v1055 = vadd.f32 %v1001, %v1018
    %v1056 = vadd.f32 %v1002, %v1022
    %v1057 = vadd.f32 %v1003, %v1026
    %v1058 = vadd.f32 %v1004, %v1030
    %v1059 = vadd.f32 %v1005, %v1018
    %v1060 = vadd.f32 %v1006, %v1022
    %v1061 = vadd.f32 %v1007, %v1026
    %v1062 = vadd.f32 %v1008, %v1030
    %v1063 = vadd.f32 %v1009, %v1018
    %v1064 = vadd.f32 %v1010, %v1022
    %v1065 = vadd.f32 %v1011, %v1026
    %v1066 = vadd.f32 %v1012, %v1030
    %1067 = vst [vmem:[#allocation2] sm:$0xff] %v1035
    %1068 = vst [vmem:[#allocation2 + $0x8] sm:$0xff] %v1036
    %1069 = vst [vmem:[#allocation2 + $0x10] sm:$0xff] %v1037
    %1070 = vst [vmem:[#allocation2 + $0x18] sm:$0xff] %v1038
    %1071 = vst [vmem:[#allocation2 + $0x20] sm:$0xff] %v1039
    %1072 = vst [vmem:[#allocation2 + $0x28] sm:$0xff] %v1040
    %1073 = vst [vmem:[#allocation2 + $0x30] sm:$0xff] %v1041
    %1074 = vst [vmem:[#allocation2 + $0x38] sm:$0xff] %v1042
    %1075 = vst [vmem:[#allocation2 + $0x40] sm:$0xff] %v1043
    %1076 = vst [vmem:[#allocation2 + $0x48] sm:$0xff] %v1044
    %1077 = vst [vmem:[#allocation2 + $0x50] sm:$0xff] %v1045
    %1078 = vst [vmem:[#allocation2 + $0x58] sm:$0xff] %v1046
    %1079 = vst [vmem:[#allocation2 + $0x60] sm:$0xff] %v1047
    %1080 = vst [vmem:[#allocation2 + $0x68] sm:$0xff] %v1048
    %1081 = vst [vmem:[#allocation2 + $0x70] sm:$0xff] %v1049
    %1082 = vst [vmem:[#allocation2 + $0x78] sm:$0xff] %v1050
    %1083 = vst [vmem:[#allocation2 + $0x80] sm:$0xff] %v1051
    %1084 = vst [vmem:[#allocation2 + $0x88] sm:$0xff] %v1052
    %1085 = vst [vmem:[#allocation2 + $0x90] sm:$0xff] %v1053
    %1086 = vst [vmem:[#allocation2 + $0x98] sm:$0xff] %v1054
    %1087 = vst [vmem:[#allocation2 + $0xa0] sm:$0xff] %v1055
    %1088 = vst [vmem:[#allocation2 + $0xa8] sm:$0xff] %v1056
    %1089 = vst [vmem:[#allocation2 + $0xb0] sm:$0xff] %v1057
    %1090 = vst [vmem:[#allocation2 + $0xb8] sm:$0xff] %v1058
    %1091 = vst [vmem:[#allocation2 + $0xc0] sm:$0xff] %v1059
    %1092 = vst [vmem:[#allocation2 + $0xc8] sm:$0xff] %v1060
    %1093 = vst [vmem:[#allocation2 + $0xd0] sm:$0xff] %v1061
    %1094 = vst [vmem:[#allocation2 + $0xd8] sm:$0xff] %v1062
    %1095 = vst [vmem:[#allocation2 + $0xe0] sm:$0xff] %v1063
    %1096 = vst [vmem:[#allocation2 + $0xe8] sm:$0xff] %v1064
    %1097 = vst [vmem:[#allocation2 + $0xf0] sm:$0xff] %v1065
    %1098 = vst [vmem:[#allocation2 + $0xf8] sm:$0xff] %v1066
    %v1099 = vld [vmem:[%s2] sm:$0x7f]
    %v1101 = vsel %vm199, %v1099, 0
    %1103 = vmatprep.subr.mxu0 0.0
    %1104 = vmatpush1.msra.mxu0 0.0
    %1105 = vmatprep.subr.mxu0 0.0
    %1106 = vmatpush1.msra.mxu0 0.0
    %1107 = vmatprep.subr.mxu0 0.0
    %1108 = vmatpush1.msra.mxu0 0.0
    %1109 = vmatprep.subr.mxu0 0.0
    %1110 = vmatpush1.msra.mxu0 0.0
    %1111 = vmatprep.subr.mxu0 0.0
    %1112 = vmatpush1.msra.mxu0 0.0
    %1113 = vmatprep.subr.mxu0 0.0
    %1114 = vmatpush1.msra.mxu0 0.0
    %1115 = vmatprep.subr.mxu0 0.0
    %1116 = vmatpush1.msra.mxu0 0.0
    %1117 = vmatprep.subr.mxu0 0.0
    %1118 = vmatpush1.msra.mxu0 0.0
    %1119 = vmatprep.subr.mxu0 0.0
    %1120 = vmatpush1.msra.mxu0 0.0
    %1121 = vmatprep.subr.mxu0 0.0
    %1122 = vmatpush1.msra.mxu0 0.0
    %1123 = vmatprep.subr.mxu0 0.0
    %1124 = vmatpush1.msra.mxu0 0.0
    %1125 = vmatprep.subr.mxu0 0.0
    %1126 = vmatpush1.msra.mxu0 0.0
    %1127 = vmatprep.subr.mxu0 0.0
    %1128 = vmatpush1.msra.mxu0 0.0
    %1129 = vmatprep.subr.mxu0 0.0
    %1130 = vmatpush1.msra.mxu0 0.0
    %1131 = vmatprep.subr.mxu0 0.0
    %1132 = vmatpush1.msra.mxu0 0.0
    %1133 = vmatprep.subr.mxu0 0.0
    %1134 = vmatpush1.msra.mxu0 %v1101
    %1135 = vmatprep.subr.mxu0 0.0
    %1136 = vmatpush2.msra.mxu0 0.0
    %1137 = vmatprep.subr.mxu0 0.0
    %1138 = vmatpush2.msra.mxu0 0.0
    %1139 = vmatprep.subr.mxu0 0.0
    %1140 = vmatpush2.msra.mxu0 0.0
    %1141 = vmatprep.subr.mxu0 0.0
    %1142 = vmatpush2.msra.mxu0 0.0
    %1143 = vmatprep.subr.mxu0 0.0
    %1144 = vmatpush2.msra.mxu0 0.0
    %1145 = vmatprep.subr.mxu0 0.0
    %1146 = vmatpush2.msra.mxu0 0.0
    %1147 = vmatprep.subr.mxu0 0.0
    %1148 = vmatpush2.msra.mxu0 0.0
    %1149 = vmatprep.subr.mxu0 0.0
    %1150 = vmatpush2.msra.mxu0 0.0
    %1151 = vmatprep.subr.mxu0 0.0
    %1152 = vmatpush2.msra.mxu0 0.0
    %1153 = vmatprep.subr.mxu0 0.0
    %1154 = vmatpush2.msra.mxu0 0.0
    %1155 = vmatprep.subr.mxu0 0.0
    %1156 = vmatpush2.msra.mxu0 0.0
    %1157 = vmatprep.subr.mxu0 0.0
    %1158 = vmatpush2.msra.mxu0 0.0
    %1159 = vmatprep.subr.mxu0 0.0
    %1160 = vmatpush2.msra.mxu0 0.0
    %1161 = vmatprep.subr.mxu0 0.0
    %1162 = vmatpush2.msra.mxu0 0.0
    %1163 = vmatprep.subr.mxu0 0.0
    %1164 = vmatpush2.msra.mxu0 0.0
    %1165 = vmatprep.subr.mxu0 0.0
    %1166 = vmatpush2.msra.mxu0 0.0
    %1167 = vmatprep.mubr.f32.mxu0 0.0
    %1168 = vmatmul.mubr.f32.gmra.mxu0 %v197
    %v1169 = vpop.f32.mrf.mxu0
    %v1170 = vadd.f32 0.0, %v1169
    %v1171 = vpop.f32.mrf.mxu0
    %1172 = vdwg.mxu0
    %v1173 = vld [vmem:[%s3] sm:$0x3]
    %v1175 = vsel %vm746, %v1173, 0
    %1177 = vmatprep.subr.mxu0 0.0
    %1178 = vmatpush1.msra.mxu0 0.0
    %1179 = vmatprep.subr.mxu0 0.0
    %1180 = vmatpush1.msra.mxu0 0.0
    %1181 = vmatprep.subr.mxu0 0.0
    %1182 = vmatpush1.msra.mxu0 0.0
    %1183 = vmatprep.subr.mxu0 0.0
    %1184 = vmatpush1.msra.mxu0 0.0
    %1185 = vmatprep.subr.mxu0 0.0
    %1186 = vmatpush1.msra.mxu0 0.0
    %1187 = vmatprep.subr.mxu0 0.0
    %1188 = vmatpush1.msra.mxu0 0.0
    %1189 = vmatprep.subr.mxu0 0.0
    %1190 = vmatpush1.msra.mxu0 0.0
    %1191 = vmatprep.subr.mxu0 0.0
    %1192 = vmatpush1.msra.mxu0 0.0
    %1193 = vmatprep.subr.mxu0 0.0
    %1194 = vmatpush1.msra.mxu0 0.0
    %1195 = vmatprep.subr.mxu0 0.0
    %1196 = vmatpush1.msra.mxu0 0.0
    %1197 = vmatprep.subr.mxu0 0.0
    %1198 = vmatpush1.msra.mxu0 0.0
    %1199 = vmatprep.subr.mxu0 0.0
    %1200 = vmatpush1.msra.mxu0 0.0
    %1201 = vmatprep.subr.mxu0 0.0
    %1202 = vmatpush1.msra.mxu0 0.0
    %1203 = vmatprep.subr.mxu0 0.0
    %1204 = vmatpush1.msra.mxu0 0.0
    %1205 = vmatprep.subr.mxu0 0.0
    %1206 = vmatpush1.msra.mxu0 0.0
    %1207 = vmatprep.subr.mxu0 0.0
    %1208 = vmatpush1.msra.mxu0 %v1175
    %1209 = vmatprep.subr.mxu0 0.0
    %1210 = vmatpush2.msra.mxu0 0.0
    %1211 = vmatprep.subr.mxu0 0.0
    %1212 = vmatpush2.msra.mxu0 0.0
    %1213 = vmatprep.subr.mxu0 0.0
    %1214 = vmatpush2.msra.mxu0 0.0
    %1215 = vmatprep.subr.mxu0 0.0
    %1216 = vmatpush2.msra.mxu0 0.0
    %1217 = vmatprep.subr.mxu0 0.0
    %1218 = vmatpush2.msra.mxu0 0.0
    %1219 = vmatprep.subr.mxu0 0.0
    %1220 = vmatpush2.msra.mxu0 0.0
    %1221 = vmatprep.subr.mxu0 0.0
    %1222 = vmatpush2.msra.mxu0 0.0
    %1223 = vmatprep.subr.mxu0 0.0
    %1224 = vmatpush2.msra.mxu0 0.0
    %1225 = vmatprep.subr.mxu0 0.0
    %1226 = vmatpush2.msra.mxu0 0.0
    %1227 = vmatprep.subr.mxu0 0.0
    %1228 = vmatpush2.msra.mxu0 0.0
    %1229 = vmatprep.subr.mxu0 0.0
    %1230 = vmatpush2.msra.mxu0 0.0
    %1231 = vmatprep.subr.mxu0 0.0
    %1232 = vmatpush2.msra.mxu0 0.0
    %1233 = vmatprep.subr.mxu0 0.0
    %1234 = vmatpush2.msra.mxu0 0.0
    %1235 = vmatprep.subr.mxu0 0.0
    %1236 = vmatpush2.msra.mxu0 0.0
    %1237 = vmatprep.subr.mxu0 0.0
    %1238 = vmatpush2.msra.mxu0 0.0
    %1239 = vmatprep.subr.mxu0 0.0
    %1240 = vmatpush2.msra.mxu0 0.0
    %1241 = vmatprep.mubr.f32.mxu0 0.0
    %1242 = vmatmul.mubr.f32.gmra.mxu0 %v744
    %v1243 = vpop.f32.mrf.mxu0
    %v1244 = vadd.f32 0.0, %v1243
    %v1245 = vpop.f32.mrf.mxu0
    %1246 = vdwg.mxu0
    %v1247 = vld [vmem:[%s0 + $0x38] sm:$0xff]
    %1249 = vrot.lane.b32.xlu0 %v1170, 4
    %v1250 = vpop.permute.xlu0 %1249
    %1253 = vrot.lane.b32.xlu0 %v1244, 8
    %v1254 = vpop.permute.xlu0 %1253
    %v1256 = vsel %vm442, %v1247, %v1250
    %vm1257 = vcmask 64512
    %v1258 = vsel %vm1257, %v1256, %v1254
    %vm1259 = vcmask 97280
    %v1260 = vsel %vm1259, %v1258, 0.0
    %1261 = vst [vmem:[#allocation6] sm:$0xff] %v1260
    %v1262 = vld [vmem:[#allocation3] sm:$0xff]
    %v1263 = vld [vmem:[#allocation3 + $0x8] sm:$0xff]
    %v1264 = vld [vmem:[#allocation3 + $0x10] sm:$0xff]
    %v1265 = vld [vmem:[#allocation3 + $0x18] sm:$0xff]
    %v1266 = vld [vmem:[#allocation3 + $0x20] sm:$0xff]
    %v1267 = vld [vmem:[#allocation3 + $0x28] sm:$0xff]
    %v1268 = vld [vmem:[#allocation3 + $0x30] sm:$0xff]
    %v1269 = vld [vmem:[#allocation3 + $0x38] sm:$0xff]
    %v1270 = vld [vmem:[#allocation3 + $0x40] sm:$0xff]
    %v1271 = vld [vmem:[#allocation3 + $0x48] sm:$0xff]
    %v1272 = vld [vmem:[#allocation3 + $0x50] sm:$0xff]
    %v1273 = vld [vmem:[#allocation3 + $0x58] sm:$0xff]
    %v1274 = vld [vmem:[#allocation3 + $0x60] sm:$0xff]
    %v1275 = vld [vmem:[#allocation3 + $0x68] sm:$0xff]
    %v1276 = vld [vmem:[#allocation3 + $0x70] sm:$0xff]
    %v1277 = vld [vmem:[#allocation3 + $0x78] sm:$0xff]
    %v1278 = vld [vmem:[#allocation3 + $0x80] sm:$0xff]
    %v1279 = vld [vmem:[#allocation3 + $0x88] sm:$0xff]
    %v1280 = vld [vmem:[#allocation3 + $0x90] sm:$0xff]
    %v1281 = vld [vmem:[#allocation3 + $0x98] sm:$0xff]
    %v1282 = vld [vmem:[#allocation3 + $0xa0] sm:$0xff]
    %v1283 = vld [vmem:[#allocation3 + $0xa8] sm:$0xff]
    %v1284 = vld [vmem:[#allocation3 + $0xb0] sm:$0xff]
    %v1285 = vld [vmem:[#allocation3 + $0xb8] sm:$0xff]
    %v1286 = vld [vmem:[#allocation3 + $0xc0] sm:$0xff]
    %v1287 = vld [vmem:[#allocation3 + $0xc8] sm:$0xff]
    %v1288 = vld [vmem:[#allocation3 + $0xd0] sm:$0xff]
    %v1289 = vld [vmem:[#allocation3 + $0xd8] sm:$0xff]
    %v1290 = vld [vmem:[#allocation3 + $0xe0] sm:$0xff]
    %v1291 = vld [vmem:[#allocation3 + $0xe8] sm:$0xff]
    %v1292 = vld [vmem:[#allocation3 + $0xf0] sm:$0xff]
    %v1293 = vld [vmem:[#allocation3 + $0xf8] sm:$0xff]
    %v1294 = vld [vmem:[#allocation3 + $0x100] sm:$0xff]
    %v1295 = vld [vmem:[#allocation3 + $0x108] sm:$0xff]
    %v1296 = vld [vmem:[#allocation3 + $0x110] sm:$0xff]
    %v1297 = vld [vmem:[#allocation3 + $0x118] sm:$0xff]
    %v1298 = vld [vmem:[#allocation3 + $0x120] sm:$0xff]
    %v1299 = vld [vmem:[#allocation3 + $0x128] sm:$0xff]
    %v1300 = vld [vmem:[#allocation3 + $0x130] sm:$0xff]
    %v1301 = vld [vmem:[#allocation3 + $0x138] sm:$0xff]
    %v1302 = vld [vmem:[#allocation3 + $0x140] sm:$0xff]
    %v1303 = vld [vmem:[#allocation3 + $0x148] sm:$0xff]
    %v1304 = vld [vmem:[#allocation3 + $0x150] sm:$0xff]
    %v1305 = vld [vmem:[#allocation3 + $0x158] sm:$0xff]
    %v1306 = vld [vmem:[#allocation3 + $0x160] sm:$0xff]
    %v1307 = vld [vmem:[#allocation3 + $0x168] sm:$0xff]
    %v1308 = vld [vmem:[#allocation3 + $0x170] sm:$0xff]
    %v1309 = vld [vmem:[#allocation3 + $0x178] sm:$0xff]
    %v1310 = vld [vmem:[#allocation3 + $0x180] sm:$0xff]
    %v1311 = vld [vmem:[#allocation3 + $0x188] sm:$0xff]
    %v1312 = vld [vmem:[#allocation3 + $0x190] sm:$0xff]
    %v1313 = vld [vmem:[#allocation3 + $0x198] sm:$0xff]
    %v1314 = vld [vmem:[#allocation3 + $0x1a0] sm:$0xff]
    %v1315 = vld [vmem:[#allocation3 + $0x1a8] sm:$0xff]
    %v1316 = vld [vmem:[#allocation3 + $0x1b0] sm:$0xff]
    %v1317 = vld [vmem:[#allocation3 + $0x1b8] sm:$0xff]
    %v1318 = vld [vmem:[#allocation3 + $0x1c0] sm:$0xff]
    %v1319 = vld [vmem:[#allocation3 + $0x1c8] sm:$0xff]
    %v1320 = vld [vmem:[#allocation3 + $0x1d0] sm:$0xff]
    %v1321 = vld [vmem:[#allocation3 + $0x1d8] sm:$0xff]
    %v1322 = vld [vmem:[#allocation3 + $0x1e0] sm:$0xff]
    %v1323 = vld [vmem:[#allocation3 + $0x1e8] sm:$0xff]
    %v1324 = vld [vmem:[#allocation3 + $0x1f0] sm:$0xff]
    %v1325 = vld [vmem:[#allocation3 + $0x1f8] sm:$0xff]
    %v1326 = vpack.c.bf16 %v1266, %v1262
    %v1327 = vpack.c.bf16 %v1267, %v1263
    %v1328 = vpack.c.bf16 %v1268, %v1264
    %v1329 = vpack.c.bf16 %v1269, %v1265
    %v1330 = vpack.c.bf16 %v1274, %v1270
    %v1331 = vpack.c.bf16 %v1275, %v1271
    %v1332 = vpack.c.bf16 %v1276, %v1272
    %v1333 = vpack.c.bf16 %v1277, %v1273
    %v1334 = vpack.c.bf16 %v1282, %v1278
    %v1335 = vpack.c.bf16 %v1283, %v1279
    %v1336 = vpack.c.bf16 %v1284, %v1280
    %v1337 = vpack.c.bf16 %v1285, %v1281
    %v1338 = vpack.c.bf16 %v1290, %v1286
    %v1339 = vpack.c.bf16 %v1291, %v1287
    %v1340 = vpack.c.bf16 %v1292, %v1288
    %v1341 = vpack.c.bf16 %v1293, %v1289
    %v1342 = vpack.c.bf16 %v1298, %v1294
    %v1343 = vpack.c.bf16 %v1299, %v1295
    %v1344 = vpack.c.bf16 %v1300, %v1296
    %v1345 = vpack.c.bf16 %v1301, %v1297
    %v1346 = vpack.c.bf16 %v1306, %v1302
    %v1347 = vpack.c.bf16 %v1307, %v1303
    %v1348 = vpack.c.bf16 %v1308, %v1304
    %v1349 = vpack.c.bf16 %v1309, %v1305
    %v1350 = vpack.c.bf16 %v1314, %v1310
    %v1351 = vpack.c.bf16 %v1315, %v1311
    %v1352 = vpack.c.bf16 %v1316, %v1312
    %v1353 = vpack.c.bf16 %v1317, %v1313
    %v1354 = vpack.c.bf16 %v1322, %v1318
    %v1355 = vpack.c.bf16 %v1323, %v1319
    %v1356 = vpack.c.bf16 %v1324, %v1320
    %v1357 = vpack.c.bf16 %v1325, %v1321
    %v1358 = vld [vmem:[#allocation2] sm:$0xff]
    %v1359 = vld [vmem:[#allocation2 + $0x8] sm:$0xff]
    %v1360 = vld [vmem:[#allocation2 + $0x10] sm:$0xff]
    %v1361 = vld [vmem:[#allocation2 + $0x18] sm:$0xff]
    %1362 = vmatprep.subr.bf16.mxu0 %v1355
    %1363 = vmatpush1.bf16.msra.mxu0 %v1354
    %1364 = vmatprep.subr.bf16.mxu0 %v1351
    %1365 = vmatpush1.bf16.msra.mxu0 %v1350
    %1366 = vmatprep.subr.bf16.mxu0 %v1347
    %1367 = vmatpush1.bf16.msra.mxu0 %v1346
    %1368 = vmatprep.subr.bf16.mxu0 %v1343
    %1369 = vmatpush1.bf16.msra.mxu0 %v1342
    %1370 = vmatprep.subr.bf16.mxu0 %v1339
    %1371 = vmatpush1.bf16.msra.mxu0 %v1338
    %1372 = vmatprep.subr.bf16.mxu0 %v1335
    %1373 = vmatpush1.bf16.msra.mxu0 %v1334
    %1374 = vmatprep.subr.bf16.mxu0 %v1331
    %1375 = vmatpush1.bf16.msra.mxu0 %v1330
    %1376 = vmatprep.subr.bf16.mxu0 %v1327
    %1377 = vmatpush1.bf16.msra.mxu0 %v1326
    %1378 = vmatprep.subr.bf16.mxu0 0
    %1379 = vmatpush2.bf16.msra.mxu0 0
    %1380 = vmatprep.subr.bf16.mxu0 0
    %1381 = vmatpush2.bf16.msra.mxu0 0
    %1382 = vmatprep.subr.bf16.mxu0 0
    %1383 = vmatpush2.bf16.msra.mxu0 0
    %1384 = vmatprep.subr.bf16.mxu0 0
    %1385 = vmatpush2.bf16.msra.mxu0 0
    %1386 = vmatprep.subr.bf16.mxu0 0
    %1387 = vmatpush2.bf16.msra.mxu0 0
    %1388 = vmatprep.subr.bf16.mxu0 0
    %1389 = vmatpush2.bf16.msra.mxu0 0
    %1390 = vmatprep.subr.bf16.mxu0 0
    %1391 = vmatpush2.bf16.msra.mxu0 0
    %1392 = vmatprep.subr.bf16.mxu0 0
    %1393 = vmatpush2.bf16.msra.mxu0 0
    %1394 = vmatprep.mubr.bf16.mxu0 0
    %1395 = vmatmul.mubr.bf16.gmra.mxu0 0
    %v1396 = vpop.f32.mrf.mxu0
    %v1397 = vadd.f32 0.0, %v1396
    %v1398 = vpop.f32.mrf.mxu0
    %v1399 = vadd.f32 0.0, %v1398
    %v1400 = vpop.f32.mrf.mxu0
    %v1401 = vpop.f32.mrf.mxu0
    %1402 = vdwg.mxu0
    %1403 = vmatprep.subr.bf16.mxu0 %v1357
    %1404 = vmatpush1.bf16.msra.mxu0 %v1356
    %1405 = vmatprep.subr.bf16.mxu0 %v1353
    %1406 = vmatpush1.bf16.msra.mxu0 %v1352
    %1407 = vmatprep.subr.bf16.mxu0 %v1349
    %1408 = vmatpush1.bf16.msra.mxu0 %v1348
    %1409 = vmatprep.subr.bf16.mxu0 %v1345
    %1410 = vmatpush1.bf16.msra.mxu0 %v1344
    %1411 = vmatprep.subr.bf16.mxu0 %v1341
    %1412 = vmatpush1.bf16.msra.mxu0 %v1340
    %1413 = vmatprep.subr.bf16.mxu0 %v1337
    %1414 = vmatpush1.bf16.msra.mxu0 %v1336
    %1415 = vmatprep.subr.bf16.mxu0 %v1333
    %1416 = vmatpush1.bf16.msra.mxu0 %v1332
    %1417 = vmatprep.subr.bf16.mxu0 %v1329
    %1418 = vmatpush1.bf16.msra.mxu0 %v1328
    %1419 = vmatprep.subr.bf16.mxu0 0
    %1420 = vmatpush2.bf16.msra.mxu0 0
    %1421 = vmatprep.subr.bf16.mxu0 0
    %1422 = vmatpush2.bf16.msra.mxu0 0
    %1423 = vmatprep.subr.bf16.mxu0 0
    %1424 = vmatpush2.bf16.msra.mxu0 0
    %1425 = vmatprep.subr.bf16.mxu0 0
    %1426 = vmatpush2.bf16.msra.mxu0 0
    %1427 = vmatprep.subr.bf16.mxu0 0
    %1428 = vmatpush2.bf16.msra.mxu0 0
    %1429 = vmatprep.subr.bf16.mxu0 0
    %1430 = vmatpush2.bf16.msra.mxu0 0
    %1431 = vmatprep.subr.bf16.mxu0 0
    %1432 = vmatpush2.bf16.msra.mxu0 0
    %1433 = vmatprep.subr.bf16.mxu0 0
    %1434 = vmatpush2.bf16.msra.mxu0 0
    %1435 = vmatprep.mubr.bf16.mxu0 0
    %1436 = vmatmul.mubr.bf16.gmra.mxu0 0
    %v1437 = vpop.f32.mrf.mxu0
    %v1438 = vadd.f32 0.0, %v1437
    %v1439 = vpop.f32.mrf.mxu0
    %v1440 = vadd.f32 0.0, %v1439
    %v1441 = vpop.f32.mrf.mxu0
    %v1442 = vpop.f32.mrf.mxu0
    %1443 = vdwg.mxu0
    %v1444 = vadd.f32 %v1358, %v1397
    %v1445 = vadd.f32 %v1359, %v1399
    %v1446 = vadd.f32 %v1360, %v1438
    %v1447 = vadd.f32 %v1361, %v1440
    %v1448 = vmul.f32 %v1444, 0.5
    %v1449 = vtanh.pop %v1448
    %v1450 = vadd.f32 %v1449, 1.0
    %v1451 = vmul.f32 %v1450, 0.5
    %v1452 = vmul.f32 %v1445, 0.5
    %v1453 = vtanh.pop %v1452
    %v1454 = vadd.f32 %v1453, 1.0
    %v1455 = vmul.f32 %v1454, 0.5
    %v1456 = vtanh.pop %v1446
    %v1457 = vmul.f32 %v1447, 0.5
    %v1458 = vtanh.pop %v1457
    %v1459 = vadd.f32 %v1458, 1.0
    %v1460 = vmul.f32 %v1459, 0.5
    %v1461 = vmul.f32 %v1455, 0.0
    %v1462 = vmul.f32 %v1451, %v1456
    %v1463 = vadd.f32 %v1461, %v1462
    %v1464 = vtanh.pop %v1463
    %v1465 = vmul.f32 %v1460, %v1464
    %1466 = vst [vmem:[#allocation7] sm:$0xff] %v1465
    %v1467 = vld [vmem:[#allocation2 + $0x20] sm:$0xff]
    %v1468 = vld [vmem:[#allocation2 + $0x28] sm:$0xff]
    %v1469 = vld [vmem:[#allocation2 + $0x30] sm:$0xff]
    %v1470 = vld [vmem:[#allocation2 + $0x38] sm:$0xff]
    %v1471 = vpack.c.bf16 %v1465, %v1465
    %1472 = vmatprep.subr.bf16.mxu0 %v1355
    %1473 = vmatpush1.bf16.msra.mxu0 %v1354
    %1474 = vmatprep.subr.bf16.mxu0 %v1351
    %1475 = vmatpush1.bf16.msra.mxu0 %v1350
    %1476 = vmatprep.subr.bf16.mxu0 %v1347
    %1477 = vmatpush1.bf16.msra.mxu0 %v1346
    %1478 = vmatprep.subr.bf16.mxu0 %v1343
    %1479 = vmatpush1.bf16.msra.mxu0 %v1342
    %1480 = vmatprep.subr.bf16.mxu0 %v1339
    %1481 = vmatpush1.bf16.msra.mxu0 %v1338
    %1482 = vmatprep.subr.bf16.mxu0 %v1335
    %1483 = vmatpush1.bf16.msra.mxu0 %v1334
    %1484 = vmatprep.subr.bf16.mxu0 %v1331
    %1485 = vmatpush1.bf16.msra.mxu0 %v1330
    %1486 = vmatprep.subr.bf16.mxu0 %v1327
    %1487 = vmatpush1.bf16.msra.mxu0 %v1326
    %1488 = vmatprep.subr.bf16.mxu0 0
    %1489 = vmatpush2.bf16.msra.mxu0 0
    %1490 = vmatprep.subr.bf16.mxu0 0
    %1491 = vmatpush2.bf16.msra.mxu0 0
    %1492 = vmatprep.subr.bf16.mxu0 0
    %1493 = vmatpush2.bf16.msra.mxu0 0
    %1494 = vmatprep.subr.bf16.mxu0 0
    %1495 = vmatpush2.bf16.msra.mxu0 0
    %1496 = vmatprep.subr.bf16.mxu0 0
    %1497 = vmatpush2.bf16.msra.mxu0 0
    %1498 = vmatprep.subr.bf16.mxu0 0
    %1499 = vmatpush2.bf16.msra.mxu0 0
    %1500 = vmatprep.subr.bf16.mxu0 0
    %1501 = vmatpush2.bf16.msra.mxu0 0
    %1502 = vmatprep.subr.bf16.mxu0 0
    %1503 = vmatpush2.bf16.msra.mxu0 0
    %1504 = vmatprep.mubr.bf16.mxu0 0
    %1505 = vmatmul.mubr.bf16.gmra.mxu0 %v1471
    %v1506 = vpop.f32.mrf.mxu0
    %v1507 = vadd.f32 0.0, %v1506
    %v1508 = vpop.f32.mrf.mxu0
    %v1509 = vadd.f32 0.0, %v1508
    %v1510 = vpop.f32.mrf.mxu0
    %v1511 = vpop.f32.mrf.mxu0
    %1512 = vdwg.mxu0
    %1513 = vmatprep.subr.bf16.mxu0 %v1357
    %1514 = vmatpush1.bf16.msra.mxu0 %v1356
    %1515 = vmatprep.subr.bf16.mxu0 %v1353
    %1516 = vmatpush1.bf16.msra.mxu0 %v1352
    %1517 = vmatprep.subr.bf16.mxu0 %v1349
    %1518 = vmatpush1.bf16.msra.mxu0 %v1348
    %1519 = vmatprep.subr.bf16.mxu0 %v1345
    %1520 = vmatpush1.bf16.msra.mxu0 %v1344
    %1521 = vmatprep.subr.bf16.mxu0 %v1341
    %1522 = vmatpush1.bf16.msra.mxu0 %v1340
    %1523 = vmatprep.subr.bf16.mxu0 %v1337
    %1524 = vmatpush1.bf16.msra.mxu0 %v1336
    %1525 = vmatprep.subr.bf16.mxu0 %v1333
    %1526 = vmatpush1.bf16.msra.mxu0 %v1332
    %1527 = vmatprep.subr.bf16.mxu0 %v1329
    %1528 = vmatpush1.bf16.msra.mxu0 %v1328
    %1529 = vmatprep.subr.bf16.mxu0 0
    %1530 = vmatpush2.bf16.msra.mxu0 0
    %1531 = vmatprep.subr.bf16.mxu0 0
    %1532 = vmatpush2.bf16.msra.mxu0 0
    %1533 = vmatprep.subr.bf16.mxu0 0
    %1534 = vmatpush2.bf16.msra.mxu0 0
    %1535 = vmatprep.subr.bf16.mxu0 0
    %1536 = vmatpush2.bf16.msra.mxu0 0
    %1537 = vmatprep.subr.bf16.mxu0 0
    %1538 = vmatpush2.bf16.msra.mxu0 0
    %1539 = vmatprep.subr.bf16.mxu0 0
    %1540 = vmatpush2.bf16.msra.mxu0 0
    %1541 = vmatprep.subr.bf16.mxu0 0
    %1542 = vmatpush2.bf16.msra.mxu0 0
    %1543 = vmatprep.subr.bf16.mxu0 0
    %1544 = vmatpush2.bf16.msra.mxu0 0
    %1545 = vmatprep.mubr.bf16.mxu0 0
    %1546 = vmatmul.mubr.bf16.gmra.mxu0 %v1471
    %v1547 = vpop.f32.mrf.mxu0
    %v1548 = vadd.f32 0.0, %v1547
    %v1549 = vpop.f32.mrf.mxu0
    %v1550 = vadd.f32 0.0, %v1549
    %v1551 = vpop.f32.mrf.mxu0
    %v1552 = vpop.f32.mrf.mxu0
    %1553 = vdwg.mxu0
    %v1554 = vadd.f32 %v1467, %v1507
    %v1555 = vadd.f32 %v1468, %v1509
    %v1556 = vadd.f32 %v1469, %v1548
    %v1557 = vadd.f32 %v1470, %v1550
    %v1558 = vmul.f32 %v1554, 0.5
    %v1559 = vtanh.pop %v1558
    %v1560 = vadd.f32 %v1559, 1.0
    %v1561 = vmul.f32 %v1560, 0.5
    %v1562 = vmul.f32 %v1555, 0.5
    %v1563 = vtanh.pop %v1562
    %v1564 = vadd.f32 %v1563, 1.0
    %v1565 = vmul.f32 %v1564, 0.5
    %v1566 = vtanh.pop %v1556
    %v1567 = vmul.f32 %v1557, 0.5
    %v1568 = vtanh.pop %v1567
    %v1569 = vadd.f32 %v1568, 1.0
    %v1570 = vmul.f32 %v1569, 0.5
    %v1571 = vmul.f32 %v1565, %v1463
    %v1572 = vmul.f32 %v1561, %v1566
    %v1573 = vadd.f32 %v1571, %v1572
    %v1574 = vtanh.pop %v1573
    %v1575 = vmul.f32 %v1570, %v1574
    %1576 = vst [vmem:[#allocation7 + $0x8] sm:$0xff] %v1575
    %v1577 = vld [vmem:[#allocation2 + $0x40] sm:$0xff]
    %v1578 = vld [vmem:[#allocation2 + $0x48] sm:$0xff]
    %v1579 = vld [vmem:[#allocation2 + $0x50] sm:$0xff]
    %v1580 = vld [vmem:[#allocation2 + $0x58] sm:$0xff]
    %v1581 = vpack.c.bf16 %v1575, %v1575
    %1582 = vmatprep.subr.bf16.mxu0 %v1355
    %1583 = vmatpush1.bf16.msra.mxu0 %v1354
    %1584 = vmatprep.subr.bf16.mxu0 %v1351
    %1585 = vmatpush1.bf16.msra.mxu0 %v1350
    %1586 = vmatprep.subr.bf16.mxu0 %v1347
    %1587 = vmatpush1.bf16.msra.mxu0 %v1346
    %1588 = vmatprep.subr.bf16.mxu0 %v1343
    %1589 = vmatpush1.bf16.msra.mxu0 %v1342
    %1590 = vmatprep.subr.bf16.mxu0 %v1339
    %1591 = vmatpush1.bf16.msra.mxu0 %v1338
    %1592 = vmatprep.subr.bf16.mxu0 %v1335
    %1593 = vmatpush1.bf16.msra.mxu0 %v1334
    %1594 = vmatprep.subr.bf16.mxu0 %v1331
    %1595 = vmatpush1.bf16.msra.mxu0 %v1330
    %1596 = vmatprep.subr.bf16.mxu0 %v1327
    %1597 = vmatpush1.bf16.msra.mxu0 %v1326
    %1598 = vmatprep.subr.bf16.mxu0 0
    %1599 = vmatpush2.bf16.msra.mxu0 0
    %1600 = vmatprep.subr.bf16.mxu0 0
    %1601 = vmatpush2.bf16.msra.mxu0 0
    %1602 = vmatprep.subr.bf16.mxu0 0
    %1603 = vmatpush2.bf16.msra.mxu0 0
    %1604 = vmatprep.subr.bf16.mxu0 0
    %1605 = vmatpush2.bf16.msra.mxu0 0
    %1606 = vmatprep.subr.bf16.mxu0 0
    %1607 = vmatpush2.bf16.msra.mxu0 0
    %1608 = vmatprep.subr.bf16.mxu0 0
    %1609 = vmatpush2.bf16.msra.mxu0 0
    %1610 = vmatprep.subr.bf16.mxu0 0
    %1611 = vmatpush2.bf16.msra.mxu0 0
    %1612 = vmatprep.subr.bf16.mxu0 0
    %1613 = vmatpush2.bf16.msra.mxu0 0
    %1614 = vmatprep.mubr.bf16.mxu0 0
    %1615 = vmatmul.mubr.bf16.gmra.mxu0 %v1581
    %v1616 = vpop.f32.mrf.mxu0
    %v1617 = vadd.f32 0.0, %v1616
    %v1618 = vpop.f32.mrf.mxu0
    %v1619 = vadd.f32 0.0, %v1618
    %v1620 = vpop.f32.mrf.mxu0
    %v1621 = vpop.f32.mrf.mxu0
    %1622 = vdwg.mxu0
    %1623 = vmatprep.subr.bf16.mxu0 %v1357
    %1624 = vmatpush1.bf16.msra.mxu0 %v1356
    %1625 = vmatprep.subr.bf16.mxu0 %v1353
    %1626 = vmatpush1.bf16.msra.mxu0 %v1352
    %1627 = vmatprep.subr.bf16.mxu0 %v1349
    %1628 = vmatpush1.bf16.msra.mxu0 %v1348
    %1629 = vmatprep.subr.bf16.mxu0 %v1345
    %1630 = vmatpush1.bf16.msra.mxu0 %v1344
    %1631 = vmatprep.subr.bf16.mxu0 %v1341
    %1632 = vmatpush1.bf16.msra.mxu0 %v1340
    %1633 = vmatprep.subr.bf16.mxu0 %v1337
    %1634 = vmatpush1.bf16.msra.mxu0 %v1336
    %1635 = vmatprep.subr.bf16.mxu0 %v1333
    %1636 = vmatpush1.bf16.msra.mxu0 %v1332
    %1637 = vmatprep.subr.bf16.mxu0 %v1329
    %1638 = vmatpush1.bf16.msra.mxu0 %v1328
    %1639 = vmatprep.subr.bf16.mxu0 0
    %1640 = vmatpush2.bf16.msra.mxu0 0
    %1641 = vmatprep.subr.bf16.mxu0 0
    %1642 = vmatpush2.bf16.msra.mxu0 0
    %1643 = vmatprep.subr.bf16.mxu0 0
    %1644 = vmatpush2.bf16.msra.mxu0 0
    %1645 = vmatprep.subr.bf16.mxu0 0
    %1646 = vmatpush2.bf16.msra.mxu0 0
    %1647 = vmatprep.subr.bf16.mxu0 0
    %1648 = vmatpush2.bf16.msra.mxu0 0
    %1649 = vmatprep.subr.bf16.mxu0 0
    %1650 = vmatpush2.bf16.msra.mxu0 0
    %1651 = vmatprep.subr.bf16.mxu0 0
    %1652 = vmatpush2.bf16.msra.mxu0 0
    %1653 = vmatprep.subr.bf16.mxu0 0
    %1654 = vmatpush2.bf16.msra.mxu0 0
    %1655 = vmatprep.mubr.bf16.mxu0 0
    %1656 = vmatmul.mubr.bf16.gmra.mxu0 %v1581
    %v1657 = vpop.f32.mrf.mxu0
    %v1658 = vadd.f32 0.0, %v1657
    %v1659 = vpop.f32.mrf.mxu0
    %v1660 = vadd.f32 0.0, %v1659
    %v1661 = vpop.f32.mrf.mxu0
    %v1662 = vpop.f32.mrf.mxu0
    %1663 = vdwg.mxu0
    %v1664 = vadd.f32 %v1577, %v1617
    %v1665 = vadd.f32 %v1578, %v1619
    %v1666 = vadd.f32 %v1579, %v1658
    %v1667 = vadd.f32 %v1580, %v1660
    %v1668 = vmul.f32 %v1664, 0.5
    %v1669 = vtanh.pop %v1668
    %v1670 = vadd.f32 %v1669, 1.0
    %v1671 = vmul.f32 %v1670, 0.5
    %v1672 = vmul.f32 %v1665, 0.5
    %v1673 = vtanh.pop %v1672
    %v1674 = vadd.f32 %v1673, 1.0
    %v1675 = vmul.f32 %v1674, 0.5
    %v1676 = vtanh.pop %v1666
    %v1677 = vmul.f32 %v1667, 0.5
    %v1678 = vtanh.pop %v1677
    %v1679 = vadd.f32 %v1678, 1.0
    %v1680 = vmul.f32 %v1679, 0.5
    %v1681 = vmul.f32 %v1675, %v1573
    %v1682 = vmul.f32 %v1671, %v1676
    %v1683 = vadd.f32 %v1681, %v1682
    %v1684 = vtanh.pop %v1683
    %v1685 = vmul.f32 %v1680, %v1684
    %1686 = vst [vmem:[#allocation7 + $0x10] sm:$0xff] %v1685
    %v1687 = vld [vmem:[#allocation2 + $0x60] sm:$0xff]
    %v1688 = vld [vmem:[#allocation2 + $0x68] sm:$0xff]
    %v1689 = vld [vmem:[#allocation2 + $0x70] sm:$0xff]
    %v1690 = vld [vmem:[#allocation2 + $0x78] sm:$0xff]
    %v1691 = vpack.c.bf16 %v1685, %v1685
    %1692 = vmatprep.subr.bf16.mxu0 %v1355
    %1693 = vmatpush1.bf16.msra.mxu0 %v1354
    %1694 = vmatprep.subr.bf16.mxu0 %v1351
    %1695 = vmatpush1.bf16.msra.mxu0 %v1350
    %1696 = vmatprep.subr.bf16.mxu0 %v1347
    %1697 = vmatpush1.bf16.msra.mxu0 %v1346
    %1698 = vmatprep.subr.bf16.mxu0 %v1343
    %1699 = vmatpush1.bf16.msra.mxu0 %v1342
    %1700 = vmatprep.subr.bf16.mxu0 %v1339
    %1701 = vmatpush1.bf16.msra.mxu0 %v1338
    %1702 = vmatprep.subr.bf16.mxu0 %v1335
    %1703 = vmatpush1.bf16.msra.mxu0 %v1334
    %1704 = vmatprep.subr.bf16.mxu0 %v1331
    %1705 = vmatpush1.bf16.msra.mxu0 %v1330
    %1706 = vmatprep.subr.bf16.mxu0 %v1327
    %1707 = vmatpush1.bf16.msra.mxu0 %v1326
    %1708 = vmatprep.subr.bf16.mxu0 0
    %1709 = vmatpush2.bf16.msra.mxu0 0
    %1710 = vmatprep.subr.bf16.mxu0 0
    %1711 = vmatpush2.bf16.msra.mxu0 0
    %1712 = vmatprep.subr.bf16.mxu0 0
    %1713 = vmatpush2.bf16.msra.mxu0 0
    %1714 = vmatprep.subr.bf16.mxu0 0
    %1715 = vmatpush2.bf16.msra.mxu0 0
    %1716 = vmatprep.subr.bf16.mxu0 0
    %1717 = vmatpush2.bf16.msra.mxu0 0
    %1718 = vmatprep.subr.bf16.mxu0 0
    %1719 = vmatpush2.bf16.msra.mxu0 0
    %1720 = vmatprep.subr.bf16.mxu0 0
    %1721 = vmatpush2.bf16.msra.mxu0 0
    %1722 = vmatprep.subr.bf16.mxu0 0
    %1723 = vmatpush2.bf16.msra.mxu0 0
    %1724 = vmatprep.mubr.bf16.mxu0 0
    %1725 = vmatmul.mubr.bf16.gmra.mxu0 %v1691
    %v1726 = vpop.f32.mrf.mxu0
    %v1727 = vadd.f32 0.0, %v1726
    %v1728 = vpop.f32.mrf.mxu0
    %v1729 = vadd.f32 0.0, %v1728
    %v1730 = vpop.f32.mrf.mxu0
    %v1731 = vpop.f32.mrf.mxu0
    %1732 = vdwg.mxu0
    %1733 = vmatprep.subr.bf16.mxu0 %v1357
    %1734 = vmatpush1.bf16.msra.mxu0 %v1356
    %1735 = vmatprep.subr.bf16.mxu0 %v1353
    %1736 = vmatpush1.bf16.msra.mxu0 %v1352
    %1737 = vmatprep.subr.bf16.mxu0 %v1349
    %1738 = vmatpush1.bf16.msra.mxu0 %v1348
    %1739 = vmatprep.subr.bf16.mxu0 %v1345
    %1740 = vmatpush1.bf16.msra.mxu0 %v1344
    %1741 = vmatprep.subr.bf16.mxu0 %v1341
    %1742 = vmatpush1.bf16.msra.mxu0 %v1340
    %1743 = vmatprep.subr.bf16.mxu0 %v1337
    %1744 = vmatpush1.bf16.msra.mxu0 %v1336
    %1745 = vmatprep.subr.bf16.mxu0 %v1333
    %1746 = vmatpush1.bf16.msra.mxu0 %v1332
    %1747 = vmatprep.subr.bf16.mxu0 %v1329
    %1748 = vmatpush1.bf16.msra.mxu0 %v1328
    %1749 = vmatprep.subr.bf16.mxu0 0
    %1750 = vmatpush2.bf16.msra.mxu0 0
    %1751 = vmatprep.subr.bf16.mxu0 0
    %1752 = vmatpush2.bf16.msra.mxu0 0
    %1753 = vmatprep.subr.bf16.mxu0 0
    %1754 = vmatpush2.bf16.msra.mxu0 0
    %1755 = vmatprep.subr.bf16.mxu0 0
    %1756 = vmatpush2.bf16.msra.mxu0 0
    %1757 = vmatprep.subr.bf16.mxu0 0
    %1758 = vmatpush2.bf16.msra.mxu0 0
    %1759 = vmatprep.subr.bf16.mxu0 0
    %1760 = vmatpush2.bf16.msra.mxu0 0
    %1761 = vmatprep.subr.bf16.mxu0 0
    %1762 = vmatpush2.bf16.msra.mxu0 0
    %1763 = vmatprep.subr.bf16.mxu0 0
    %1764 = vmatpush2.bf16.msra.mxu0 0
    %1765 = vmatprep.mubr.bf16.mxu0 0
    %1766 = vmatmul.mubr.bf16.gmra.mxu0 %v1691
    %v1767 = vpop.f32.mrf.mxu0
    %v1768 = vadd.f32 0.0, %v1767
    %v1769 = vpop.f32.mrf.mxu0
    %v1770 = vadd.f32 0.0, %v1769
    %v1771 = vpop.f32.mrf.mxu0
    %v1772 = vpop.f32.mrf.mxu0
    %1773 = vdwg.mxu0
    %v1774 = vadd.f32 %v1687, %v1727
    %v1775 = vadd.f32 %v1688, %v1729
    %v1776 = vadd.f32 %v1689, %v1768
    %v1777 = vadd.f32 %v1690, %v1770
    %v1778 = vmul.f32 %v1774, 0.5
    %v1779 = vtanh.pop %v1778
    %v1780 = vadd.f32 %v1779, 1.0
    %v1781 = vmul.f32 %v1780, 0.5
    %v1782 = vmul.f32 %v1775, 0.5
    %v1783 = vtanh.pop %v1782
    %v1784 = vadd.f32 %v1783, 1.0
    %v1785 = vmul.f32 %v1784, 0.5
    %v1786 = vtanh.pop %v1776
    %v1787 = vmul.f32 %v1777, 0.5
    %v1788 = vtanh.pop %v1787
    %v1789 = vadd.f32 %v1788, 1.0
    %v1790 = vmul.f32 %v1789, 0.5
    %v1791 = vmul.f32 %v1785, %v1683
    %v1792 = vmul.f32 %v1781, %v1786
    %v1793 = vadd.f32 %v1791, %v1792
    %v1794 = vtanh.pop %v1793
    %v1795 = vmul.f32 %v1790, %v1794
    %1796 = vst [vmem:[#allocation7 + $0x18] sm:$0xff] %v1795
    %v1797 = vld [vmem:[#allocation2 + $0x80] sm:$0xff]
    %v1798 = vld [vmem:[#allocation2 + $0x88] sm:$0xff]
    %v1799 = vld [vmem:[#allocation2 + $0x90] sm:$0xff]
    %v1800 = vld [vmem:[#allocation2 + $0x98] sm:$0xff]
    %v1801 = vpack.c.bf16 %v1795, %v1795
    %1802 = vmatprep.subr.bf16.mxu0 %v1355
    %1803 = vmatpush1.bf16.msra.mxu0 %v1354
    %1804 = vmatprep.subr.bf16.mxu0 %v1351
    %1805 = vmatpush1.bf16.msra.mxu0 %v1350
    %1806 = vmatprep.subr.bf16.mxu0 %v1347
    %1807 = vmatpush1.bf16.msra.mxu0 %v1346
    %1808 = vmatprep.subr.bf16.mxu0 %v1343
    %1809 = vmatpush1.bf16.msra.mxu0 %v1342
    %1810 = vmatprep.subr.bf16.mxu0 %v1339
    %1811 = vmatpush1.bf16.msra.mxu0 %v1338
    %1812 = vmatprep.subr.bf16.mxu0 %v1335
    %1813 = vmatpush1.bf16.msra.mxu0 %v1334
    %1814 = vmatprep.subr.bf16.mxu0 %v1331
    %1815 = vmatpush1.bf16.msra.mxu0 %v1330
    %1816 = vmatprep.subr.bf16.mxu0 %v1327
    %1817 = vmatpush1.bf16.msra.mxu0 %v1326
    %1818 = vmatprep.subr.bf16.mxu0 0
    %1819 = vmatpush2.bf16.msra.mxu0 0
    %1820 = vmatprep.subr.bf16.mxu0 0
    %1821 = vmatpush2.bf16.msra.mxu0 0
    %1822 = vmatprep.subr.bf16.mxu0 0
    %1823 = vmatpush2.bf16.msra.mxu0 0
    %1824 = vmatprep.subr.bf16.mxu0 0
    %1825 = vmatpush2.bf16.msra.mxu0 0
    %1826 = vmatprep.subr.bf16.mxu0 0
    %1827 = vmatpush2.bf16.msra.mxu0 0
    %1828 = vmatprep.subr.bf16.mxu0 0
    %1829 = vmatpush2.bf16.msra.mxu0 0
    %1830 = vmatprep.subr.bf16.mxu0 0
    %1831 = vmatpush2.bf16.msra.mxu0 0
    %1832 = vmatprep.subr.bf16.mxu0 0
    %1833 = vmatpush2.bf16.msra.mxu0 0
    %1834 = vmatprep.mubr.bf16.mxu0 0
    %1835 = vmatmul.mubr.bf16.gmra.mxu0 %v1801
    %v1836 = vpop.f32.mrf.mxu0
    %v1837 = vadd.f32 0.0, %v1836
    %v1838 = vpop.f32.mrf.mxu0
    %v1839 = vadd.f32 0.0, %v1838
    %v1840 = vpop.f32.mrf.mxu0
    %v1841 = vpop.f32.mrf.mxu0
    %1842 = vdwg.mxu0
    %1843 = vmatprep.subr.bf16.mxu0 %v1357
    %1844 = vmatpush1.bf16.msra.mxu0 %v1356
    %1845 = vmatprep.subr.bf16.mxu0 %v1353
    %1846 = vmatpush1.bf16.msra.mxu0 %v1352
    %1847 = vmatprep.subr.bf16.mxu0 %v1349
    %1848 = vmatpush1.bf16.msra.mxu0 %v1348
    %1849 = vmatprep.subr.bf16.mxu0 %v1345
    %1850 = vmatpush1.bf16.msra.mxu0 %v1344
    %1851 = vmatprep.subr.bf16.mxu0 %v1341
    %1852 = vmatpush1.bf16.msra.mxu0 %v1340
    %1853 = vmatprep.subr.bf16.mxu0 %v1337
    %1854 = vmatpush1.bf16.msra.mxu0 %v1336
    %1855 = vmatprep.subr.bf16.mxu0 %v1333
    %1856 = vmatpush1.bf16.msra.mxu0 %v1332
    %1857 = vmatprep.subr.bf16.mxu0 %v1329
    %1858 = vmatpush1.bf16.msra.mxu0 %v1328
    %1859 = vmatprep.subr.bf16.mxu0 0
    %1860 = vmatpush2.bf16.msra.mxu0 0
    %1861 = vmatprep.subr.bf16.mxu0 0
    %1862 = vmatpush2.bf16.msra.mxu0 0
    %1863 = vmatprep.subr.bf16.mxu0 0
    %1864 = vmatpush2.bf16.msra.mxu0 0
    %1865 = vmatprep.subr.bf16.mxu0 0
    %1866 = vmatpush2.bf16.msra.mxu0 0
    %1867 = vmatprep.subr.bf16.mxu0 0
    %1868 = vmatpush2.bf16.msra.mxu0 0
    %1869 = vmatprep.subr.bf16.mxu0 0
    %1870 = vmatpush2.bf16.msra.mxu0 0
    %1871 = vmatprep.subr.bf16.mxu0 0
    %1872 = vmatpush2.bf16.msra.mxu0 0
    %1873 = vmatprep.subr.bf16.mxu0 0
    %1874 = vmatpush2.bf16.msra.mxu0 0
    %1875 = vmatprep.mubr.bf16.mxu0 0
    %1876 = vmatmul.mubr.bf16.gmra.mxu0 %v1801
    %v1877 = vpop.f32.mrf.mxu0
    %v1878 = vadd.f32 0.0, %v1877
    %v1879 = vpop.f32.mrf.mxu0
    %v1880 = vadd.f32 0.0, %v1879
    %v1881 = vpop.f32.mrf.mxu0
    %v1882 = vpop.f32.mrf.mxu0
    %1883 = vdwg.mxu0
    %v1884 = vadd.f32 %v1797, %v1837
    %v1885 = vadd.f32 %v1798, %v1839
    %v1886 = vadd.f32 %v1799, %v1878
    %v1887 = vadd.f32 %v1800, %v1880
    %v1888 = vmul.f32 %v1884, 0.5
    %v1889 = vtanh.pop %v1888
    %v1890 = vadd.f32 %v1889, 1.0
    %v1891 = vmul.f32 %v1890, 0.5
    %v1892 = vmul.f32 %v1885, 0.5
    %v1893 = vtanh.pop %v1892
    %v1894 = vadd.f32 %v1893, 1.0
    %v1895 = vmul.f32 %v1894, 0.5
    %v1896 = vtanh.pop %v1886
    %v1897 = vmul.f32 %v1887, 0.5
    %v1898 = vtanh.pop %v1897
    %v1899 = vadd.f32 %v1898, 1.0
    %v1900 = vmul.f32 %v1899, 0.5
    %v1901 = vmul.f32 %v1895, %v1793
    %v1902 = vmul.f32 %v1891, %v1896
    %v1903 = vadd.f32 %v1901, %v1902
    %v1904 = vtanh.pop %v1903
    %v1905 = vmul.f32 %v1900, %v1904
    %1906 = vst [vmem:[#allocation7 + $0x20] sm:$0xff] %v1905
    %v1907 = vld [vmem:[#allocation2 + $0xa0] sm:$0xff]
    %v1908 = vld [vmem:[#allocation2 + $0xa8] sm:$0xff]
    %v1909 = vld [vmem:[#allocation2 + $0xb0] sm:$0xff]
    %v1910 = vld [vmem:[#allocation2 + $0xb8] sm:$0xff]
    %v1911 = vpack.c.bf16 %v1905, %v1905
    %1912 = vmatprep.subr.bf16.mxu0 %v1355
    %1913 = vmatpush1.bf16.msra.mxu0 %v1354
    %1914 = vmatprep.subr.bf16.mxu0 %v1351
    %1915 = vmatpush1.bf16.msra.mxu0 %v1350
    %1916 = vmatprep.subr.bf16.mxu0 %v1347
    %1917 = vmatpush1.bf16.msra.mxu0 %v1346
    %1918 = vmatprep.subr.bf16.mxu0 %v1343
    %1919 = vmatpush1.bf16.msra.mxu0 %v1342
    %1920 = vmatprep.subr.bf16.mxu0 %v1339
    %1921 = vmatpush1.bf16.msra.mxu0 %v1338
    %1922 = vmatprep.subr.bf16.mxu0 %v1335
    %1923 = vmatpush1.bf16.msra.mxu0 %v1334
    %1924 = vmatprep.subr.bf16.mxu0 %v1331
    %1925 = vmatpush1.bf16.msra.mxu0 %v1330
    %1926 = vmatprep.subr.bf16.mxu0 %v1327
    %1927 = vmatpush1.bf16.msra.mxu0 %v1326
    %1928 = vmatprep.subr.bf16.mxu0 0
    %1929 = vmatpush2.bf16.msra.mxu0 0
    %1930 = vmatprep.subr.bf16.mxu0 0
    %1931 = vmatpush2.bf16.msra.mxu0 0
    %1932 = vmatprep.subr.bf16.mxu0 0
    %1933 = vmatpush2.bf16.msra.mxu0 0
    %1934 = vmatprep.subr.bf16.mxu0 0
    %1935 = vmatpush2.bf16.msra.mxu0 0
    %1936 = vmatprep.subr.bf16.mxu0 0
    %1937 = vmatpush2.bf16.msra.mxu0 0
    %1938 = vmatprep.subr.bf16.mxu0 0
    %1939 = vmatpush2.bf16.msra.mxu0 0
    %1940 = vmatprep.subr.bf16.mxu0 0
    %1941 = vmatpush2.bf16.msra.mxu0 0
    %1942 = vmatprep.subr.bf16.mxu0 0
    %1943 = vmatpush2.bf16.msra.mxu0 0
    %1944 = vmatprep.mubr.bf16.mxu0 0
    %1945 = vmatmul.mubr.bf16.gmra.mxu0 %v1911
    %v1946 = vpop.f32.mrf.mxu0
    %v1947 = vadd.f32 0.0, %v1946
    %v1948 = vpop.f32.mrf.mxu0
    %v1949 = vadd.f32 0.0, %v1948
    %v1950 = vpop.f32.mrf.mxu0
    %v1951 = vpop.f32.mrf.mxu0
    %1952 = vdwg.mxu0
    %1953 = vmatprep.subr.bf16.mxu0 %v1357
    %1954 = vmatpush1.bf16.msra.mxu0 %v1356
    %1955 = vmatprep.subr.bf16.mxu0 %v1353
    %1956 = vmatpush1.bf16.msra.mxu0 %v1352
    %1957 = vmatprep.subr.bf16.mxu0 %v1349
    %1958 = vmatpush1.bf16.msra.mxu0 %v1348
    %1959 = vmatprep.subr.bf16.mxu0 %v1345
    %1960 = vmatpush1.bf16.msra.mxu0 %v1344
    %1961 = vmatprep.subr.bf16.mxu0 %v1341
    %1962 = vmatpush1.bf16.msra.mxu0 %v1340
    %1963 = vmatprep.subr.bf16.mxu0 %v1337
    %1964 = vmatpush1.bf16.msra.mxu0 %v1336
    %1965 = vmatprep.subr.bf16.mxu0 %v1333
    %1966 = vmatpush1.bf16.msra.mxu0 %v1332
    %1967 = vmatprep.subr.bf16.mxu0 %v1329
    %1968 = vmatpush1.bf16.msra.mxu0 %v1328
    %1969 = vmatprep.subr.bf16.mxu0 0
    %1970 = vmatpush2.bf16.msra.mxu0 0
    %1971 = vmatprep.subr.bf16.mxu0 0
    %1972 = vmatpush2.bf16.msra.mxu0 0
    %1973 = vmatprep.subr.bf16.mxu0 0
    %1974 = vmatpush2.bf16.msra.mxu0 0
    %1975 = vmatprep.subr.bf16.mxu0 0
    %1976 = vmatpush2.bf16.msra.mxu0 0
    %1977 = vmatprep.subr.bf16.mxu0 0
    %1978 = vmatpush2.bf16.msra.mxu0 0
    %1979 = vmatprep.subr.bf16.mxu0 0
    %1980 = vmatpush2.bf16.msra.mxu0 0
    %1981 = vmatprep.subr.bf16.mxu0 0
    %1982 = vmatpush2.bf16.msra.mxu0 0
    %1983 = vmatprep.subr.bf16.mxu0 0
    %1984 = vmatpush2.bf16.msra.mxu0 0
    %1985 = vmatprep.mubr.bf16.mxu0 0
    %1986 = vmatmul.mubr.bf16.gmra.mxu0 %v1911
    %v1987 = vpop.f32.mrf.mxu0
    %v1988 = vadd.f32 0.0, %v1987
    %v1989 = vpop.f32.mrf.mxu0
    %v1990 = vadd.f32 0.0, %v1989
    %v1991 = vpop.f32.mrf.mxu0
    %v1992 = vpop.f32.mrf.mxu0
    %1993 = vdwg.mxu0
    %v1994 = vadd.f32 %v1907, %v1947
    %v1995 = vadd.f32 %v1908, %v1949
    %v1996 = vadd.f32 %v1909, %v1988
    %v1997 = vadd.f32 %v1910, %v1990
    %v1998 = vmul.f32 %v1994, 0.5
    %v1999 = vtanh.pop %v1998
    %v2000 = vadd.f32 %v1999, 1.0
    %v2001 = vmul.f32 %v2000, 0.5
    %v2002 = vmul.f32 %v1995, 0.5
    %v2003 = vtanh.pop %v2002
    %v2004 = vadd.f32 %v2003, 1.0
    %v2005 = vmul.f32 %v2004, 0.5
    %v2006 = vtanh.pop %v1996
    %v2007 = vmul.f32 %v1997, 0.5
    %v2008 = vtanh.pop %v2007
    %v2009 = vadd.f32 %v2008, 1.0
    %v2010 = vmul.f32 %v2009, 0.5
    %v2011 = vmul.f32 %v2005, %v1903
    %v2012 = vmul.f32 %v2001, %v2006
    %v2013 = vadd.f32 %v2011, %v2012
    %v2014 = vtanh.pop %v2013
    %v2015 = vmul.f32 %v2010, %v2014
    %2016 = vst [vmem:[#allocation7 + $0x28] sm:$0xff] %v2015
    %v2017 = vld [vmem:[#allocation2 + $0xc0] sm:$0xff]
    %v2018 = vld [vmem:[#allocation2 + $0xc8] sm:$0xff]
    %v2019 = vld [vmem:[#allocation2 + $0xd0] sm:$0xff]
    %v2020 = vld [vmem:[#allocation2 + $0xd8] sm:$0xff]
    %v2021 = vpack.c.bf16 %v2015, %v2015
    %2022 = vmatprep.subr.bf16.mxu0 %v1355
    %2023 = vmatpush1.bf16.msra.mxu0 %v1354
    %2024 = vmatprep.subr.bf16.mxu0 %v1351
    %2025 = vmatpush1.bf16.msra.mxu0 %v1350
    %2026 = vmatprep.subr.bf16.mxu0 %v1347
    %2027 = vmatpush1.bf16.msra.mxu0 %v1346
    %2028 = vmatprep.subr.bf16.mxu0 %v1343
    %2029 = vmatpush1.bf16.msra.mxu0 %v1342
    %2030 = vmatprep.subr.bf16.mxu0 %v1339
    %2031 = vmatpush1.bf16.msra.mxu0 %v1338
    %2032 = vmatprep.subr.bf16.mxu0 %v1335
    %2033 = vmatpush1.bf16.msra.mxu0 %v1334
    %2034 = vmatprep.subr.bf16.mxu0 %v1331
    %2035 = vmatpush1.bf16.msra.mxu0 %v1330
    %2036 = vmatprep.subr.bf16.mxu0 %v1327
    %2037 = vmatpush1.bf16.msra.mxu0 %v1326
    %2038 = vmatprep.subr.bf16.mxu0 0
    %2039 = vmatpush2.bf16.msra.mxu0 0
    %2040 = vmatprep.subr.bf16.mxu0 0
    %2041 = vmatpush2.bf16.msra.mxu0 0
    %2042 = vmatprep.subr.bf16.mxu0 0
    %2043 = vmatpush2.bf16.msra.mxu0 0
    %2044 = vmatprep.subr.bf16.mxu0 0
    %2045 = vmatpush2.bf16.msra.mxu0 0
    %2046 = vmatprep.subr.bf16.mxu0 0
    %2047 = vmatpush2.bf16.msra.mxu0 0
    %2048 = vmatprep.subr.bf16.mxu0 0
    %2049 = vmatpush2.bf16.msra.mxu0 0
    %2050 = vmatprep.subr.bf16.mxu0 0
    %2051 = vmatpush2.bf16.msra.mxu0 0
    %2052 = vmatprep.subr.bf16.mxu0 0
    %2053 = vmatpush2.bf16.msra.mxu0 0
    %2054 = vmatprep.mubr.bf16.mxu0 0
    %2055 = vmatmul.mubr.bf16.gmra.mxu0 %v2021
    %v2056 = vpop.f32.mrf.mxu0
    %v2057 = vadd.f32 0.0, %v2056
    %v2058 = vpop.f32.mrf.mxu0
    %v2059 = vadd.f32 0.0, %v2058
    %v2060 = vpop.f32.mrf.mxu0
    %v2061 = vpop.f32.mrf.mxu0
    %2062 = vdwg.mxu0
    %2063 = vmatprep.subr.bf16.mxu0 %v1357
    %2064 = vmatpush1.bf16.msra.mxu0 %v1356
    %2065 = vmatprep.subr.bf16.mxu0 %v1353
    %2066 = vmatpush1.bf16.msra.mxu0 %v1352
    %2067 = vmatprep.subr.bf16.mxu0 %v1349
    %2068 = vmatpush1.bf16.msra.mxu0 %v1348
    %2069 = vmatprep.subr.bf16.mxu0 %v1345
    %2070 = vmatpush1.bf16.msra.mxu0 %v1344
    %2071 = vmatprep.subr.bf16.mxu0 %v1341
    %2072 = vmatpush1.bf16.msra.mxu0 %v1340
    %2073 = vmatprep.subr.bf16.mxu0 %v1337
    %2074 = vmatpush1.bf16.msra.mxu0 %v1336
    %2075 = vmatprep.subr.bf16.mxu0 %v1333
    %2076 = vmatpush1.bf16.msra.mxu0 %v1332
    %2077 = vmatprep.subr.bf16.mxu0 %v1329
    %2078 = vmatpush1.bf16.msra.mxu0 %v1328
    %2079 = vmatprep.subr.bf16.mxu0 0
    %2080 = vmatpush2.bf16.msra.mxu0 0
    %2081 = vmatprep.subr.bf16.mxu0 0
    %2082 = vmatpush2.bf16.msra.mxu0 0
    %2083 = vmatprep.subr.bf16.mxu0 0
    %2084 = vmatpush2.bf16.msra.mxu0 0
    %2085 = vmatprep.subr.bf16.mxu0 0
    %2086 = vmatpush2.bf16.msra.mxu0 0
    %2087 = vmatprep.subr.bf16.mxu0 0
    %2088 = vmatpush2.bf16.msra.mxu0 0
    %2089 = vmatprep.subr.bf16.mxu0 0
    %2090 = vmatpush2.bf16.msra.mxu0 0
    %2091 = vmatprep.subr.bf16.mxu0 0
    %2092 = vmatpush2.bf16.msra.mxu0 0
    %2093 = vmatprep.subr.bf16.mxu0 0
    %2094 = vmatpush2.bf16.msra.mxu0 0
    %2095 = vmatprep.mubr.bf16.mxu0 0
    %2096 = vmatmul.mubr.bf16.gmra.mxu0 %v2021
    %v2097 = vpop.f32.mrf.mxu0
    %v2098 = vadd.f32 0.0, %v2097
    %v2099 = vpop.f32.mrf.mxu0
    %v2100 = vadd.f32 0.0, %v2099
    %v2101 = vpop.f32.mrf.mxu0
    %v2102 = vpop.f32.mrf.mxu0
    %2103 = vdwg.mxu0
    %v2104 = vadd.f32 %v2017, %v2057
    %v2105 = vadd.f32 %v2018, %v2059
    %v2106 = vadd.f32 %v2019, %v2098
    %v2107 = vadd.f32 %v2020, %v2100
    %v2108 = vmul.f32 %v2104, 0.5
    %v2109 = vtanh.pop %v2108
    %v2110 = vadd.f32 %v2109, 1.0
    %v2111 = vmul.f32 %v2110, 0.5
    %v2112 = vmul.f32 %v2105, 0.5
    %v2113 = vtanh.pop %v2112
    %v2114 = vadd.f32 %v2113, 1.0
    %v2115 = vmul.f32 %v2114, 0.5
    %v2116 = vtanh.pop %v2106
    %v2117 = vmul.f32 %v2107, 0.5
    %v2118 = vtanh.pop %v2117
    %v2119 = vadd.f32 %v2118, 1.0
    %v2120 = vmul.f32 %v2119, 0.5
    %v2121 = vmul.f32 %v2115, %v2013
    %v2122 = vmul.f32 %v2111, %v2116
    %v2123 = vadd.f32 %v2121, %v2122
    %v2124 = vtanh.pop %v2123
    %v2125 = vmul.f32 %v2120, %v2124
    %2126 = vst [vmem:[#allocation7 + $0x30] sm:$0xff] %v2125
    %v2127 = vld [vmem:[#allocation2 + $0xe0] sm:$0xff]
    %v2128 = vld [vmem:[#allocation2 + $0xe8] sm:$0xff]
    %v2129 = vld [vmem:[#allocation2 + $0xf0] sm:$0xff]
    %v2130 = vld [vmem:[#allocation2 + $0xf8] sm:$0xff]
    %v2131 = vpack.c.bf16 %v2125, %v2125
    %2132 = vmatprep.subr.bf16.mxu0 %v1355
    %2133 = vmatpush1.bf16.msra.mxu0 %v1354
    %2134 = vmatprep.subr.bf16.mxu0 %v1351
    %2135 = vmatpush1.bf16.msra.mxu0 %v1350
    %2136 = vmatprep.subr.bf16.mxu0 %v1347
    %2137 = vmatpush1.bf16.msra.mxu0 %v1346
    %2138 = vmatprep.subr.bf16.mxu0 %v1343
    %2139 = vmatpush1.bf16.msra.mxu0 %v1342
    %2140 = vmatprep.subr.bf16.mxu0 %v1339
    %2141 = vmatpush1.bf16.msra.mxu0 %v1338
    %2142 = vmatprep.subr.bf16.mxu0 %v1335
    %2143 = vmatpush1.bf16.msra.mxu0 %v1334
    %2144 = vmatprep.subr.bf16.mxu0 %v1331
    %2145 = vmatpush1.bf16.msra.mxu0 %v1330
    %2146 = vmatprep.subr.bf16.mxu0 %v1327
    %2147 = vmatpush1.bf16.msra.mxu0 %v1326
    %2148 = vmatprep.subr.bf16.mxu0 0
    %2149 = vmatpush2.bf16.msra.mxu0 0
    %2150 = vmatprep.subr.bf16.mxu0 0
    %2151 = vmatpush2.bf16.msra.mxu0 0
    %2152 = vmatprep.subr.bf16.mxu0 0
    %2153 = vmatpush2.bf16.msra.mxu0 0
    %2154 = vmatprep.subr.bf16.mxu0 0
    %2155 = vmatpush2.bf16.msra.mxu0 0
    %2156 = vmatprep.subr.bf16.mxu0 0
    %2157 = vmatpush2.bf16.msra.mxu0 0
    %2158 = vmatprep.subr.bf16.mxu0 0
    %2159 = vmatpush2.bf16.msra.mxu0 0
    %2160 = vmatprep.subr.bf16.mxu0 0
    %2161 = vmatpush2.bf16.msra.mxu0 0
    %2162 = vmatprep.subr.bf16.mxu0 0
    %2163 = vmatpush2.bf16.msra.mxu0 0
    %2164 = vmatprep.mubr.bf16.mxu0 0
    %2165 = vmatmul.mubr.bf16.gmra.mxu0 %v2131
    %v2166 = vpop.f32.mrf.mxu0
    %v2167 = vadd.f32 0.0, %v2166
    %v2168 = vpop.f32.mrf.mxu0
    %v2169 = vadd.f32 0.0, %v2168
    %v2170 = vpop.f32.mrf.mxu0
    %v2171 = vpop.f32.mrf.mxu0
    %2172 = vdwg.mxu0
    %2173 = vmatprep.subr.bf16.mxu0 %v1357
    %2174 = vmatpush1.bf16.msra.mxu0 %v1356
    %2175 = vmatprep.subr.bf16.mxu0 %v1353
    %2176 = vmatpush1.bf16.msra.mxu0 %v1352
    %2177 = vmatprep.subr.bf16.mxu0 %v1349
    %2178 = vmatpush1.bf16.msra.mxu0 %v1348
    %2179 = vmatprep.subr.bf16.mxu0 %v1345
    %2180 = vmatpush1.bf16.msra.mxu0 %v1344
    %2181 = vmatprep.subr.bf16.mxu0 %v1341
    %2182 = vmatpush1.bf16.msra.mxu0 %v1340
    %2183 = vmatprep.subr.bf16.mxu0 %v1337
    %2184 = vmatpush1.bf16.msra.mxu0 %v1336
    %2185 = vmatprep.subr.bf16.mxu0 %v1333
    %2186 = vmatpush1.bf16.msra.mxu0 %v1332
    %2187 = vmatprep.subr.bf16.mxu0 %v1329
    %2188 = vmatpush1.bf16.msra.mxu0 %v1328
    %2189 = vmatprep.subr.bf16.mxu0 0
    %2190 = vmatpush2.bf16.msra.mxu0 0
    %2191 = vmatprep.subr.bf16.mxu0 0
    %2192 = vmatpush2.bf16.msra.mxu0 0
    %2193 = vmatprep.subr.bf16.mxu0 0
    %2194 = vmatpush2.bf16.msra.mxu0 0
    %2195 = vmatprep.subr.bf16.mxu0 0
    %2196 = vmatpush2.bf16.msra.mxu0 0
    %2197 = vmatprep.subr.bf16.mxu0 0
    %2198 = vmatpush2.bf16.msra.mxu0 0
    %2199 = vmatprep.subr.bf16.mxu0 0
    %2200 = vmatpush2.bf16.msra.mxu0 0
    %2201 = vmatprep.subr.bf16.mxu0 0
    %2202 = vmatpush2.bf16.msra.mxu0 0
    %2203 = vmatprep.subr.bf16.mxu0 0
    %2204 = vmatpush2.bf16.msra.mxu0 0
    %2205 = vmatprep.mubr.bf16.mxu0 0
    %2206 = vmatmul.mubr.bf16.gmra.mxu0 %v2131
    %v2207 = vpop.f32.mrf.mxu0
    %v2208 = vadd.f32 0.0, %v2207
    %v2209 = vpop.f32.mrf.mxu0
    %v2210 = vadd.f32 0.0, %v2209
    %v2211 = vpop.f32.mrf.mxu0
    %v2212 = vpop.f32.mrf.mxu0
    %2213 = vdwg.mxu0
    %v2214 = vadd.f32 %v2127, %v2167
    %v2215 = vadd.f32 %v2128, %v2169
    %v2216 = vadd.f32 %v2129, %v2208
    %v2217 = vadd.f32 %v2130, %v2210
    %v2218 = vmul.f32 %v2214, 0.5
    %v2219 = vtanh.pop %v2218
    %v2220 = vadd.f32 %v2219, 1.0
    %v2221 = vmul.f32 %v2220, 0.5
    %v2222 = vmul.f32 %v2215, 0.5
    %v2223 = vtanh.pop %v2222
    %v2224 = vadd.f32 %v2223, 1.0
    %v2225 = vmul.f32 %v2224, 0.5
    %v2226 = vtanh.pop %v2216
    %v2227 = vmul.f32 %v2217, 0.5
    %v2228 = vtanh.pop %v2227
    %v2229 = vadd.f32 %v2228, 1.0
    %v2230 = vmul.f32 %v2229, 0.5
    %v2231 = vmul.f32 %v2225, %v2123
    %v2232 = vmul.f32 %v2221, %v2226
    %v2233 = vadd.f32 %v2231, %v2232
    %v2234 = vtanh.pop %v2233
    %v2235 = vmul.f32 %v2230, %v2234
    %2236 = vst [vmem:[#allocation7 + $0x38] sm:$0xff] %v2235
    %2237 = vst [vmem:[#allocation9] sm:$0xff] %v2235
    %2238 = vst [vmem:[#allocation10] sm:$0xff] %v2233
    // Predicated region
    $region42: #{tpu_custom_call.1} parent=1 // pred_check
      _
    $region43: #{tpu_custom_call.1} parent=1 // pred_check_branch
      %2240 = sbr.rel (0) target = $region45
    $region44: #{tpu_custom_call.1} parent=1 // pred_region
      %s2242 = ssub.s32 128, 128
      %2243 = vsyncadd [#allocation5], %s2242
      %s2245 = sshll.u32 [#allocation6], 4
      %s2246 = int_to_ptr.vmem [resolvable:$true] %s2245
      %2248 = dma.vmem_to_hbm [thread:$0]  %s2246, 128, %s9, [#allocation5]
    $region45: #{tpu_custom_call.1} parent=1 // pred_fallthru
      _
    // Predicated region
    $region46: #{tpu_custom_call.1} parent=1 // pred_check
      _
    $region47: #{tpu_custom_call.1} parent=1 // pred_check_branch
      %2250 = sbr.rel (0) target = $region49
    $region48: #{tpu_custom_call.1} parent=1 // pred_region
      %s2252 = ssub.s32 1024, 1024
      %2253 = vsyncadd [#allocation8], %s2252
      %s2255 = sshll.u32 [#allocation7], 4
      %s2256 = int_to_ptr.vmem [resolvable:$true] %s2255
      %2258 = dma.vmem_to_hbm [thread:$0]  %s2256, 1024, %s10, [#allocation8]
    $region49: #{tpu_custom_call.1} parent=1 // pred_fallthru
      _
    // Predicated region
    $region50: #{tpu_custom_call.1} parent=1 // pred_check
      _
    $region51: #{tpu_custom_call.1} parent=1 // pred_check_branch
      %2260 = sbr.rel (0) target = $region53
    $region52: #{tpu_custom_call.1} parent=1 // pred_region
      %s2262 = ssub.s32 128, 128
      %2263 = vsyncadd [#allocation8], %s2262
      %s2265 = sshll.u32 [#allocation9], 4
      %s2266 = int_to_ptr.vmem [resolvable:$true] %s2265
      %2268 = dma.vmem_to_hbm [thread:$0]  %s2266, 128, %s11, [#allocation8]
    $region53: #{tpu_custom_call.1} parent=1 // pred_fallthru
      _
    // Predicated region
    $region54: #{tpu_custom_call.1} parent=1 // pred_check
      _
    $region55: #{tpu_custom_call.1} parent=1 // pred_check_branch
      %2270 = sbr.rel (0) target = $region57
    $region56: #{tpu_custom_call.1} parent=1 // pred_region
      %s2272 = ssub.s32 128, 128
      %2273 = vsyncadd [#allocation11], %s2272
      %s2275 = sshll.u32 [#allocation10], 4
      %s2276 = int_to_ptr.vmem [resolvable:$true] %s2275
      %2278 = dma.vmem_to_hbm [thread:$0]  %s2276, 128, %s12, [#allocation11]
    $region57: #{tpu_custom_call.1} parent=1 // pred_fallthru
      _
    // Predicated region
    $region58: #{tpu_custom_call.1} parent=1 // pred_check
      _
    $region59: #{tpu_custom_call.1} parent=1 // pred_check_branch
      %2280 = sbr.rel (0) target = $region61
    $region60: #{tpu_custom_call.1} parent=1 // pred_region
      %2281 = dma.done [#allocation5], 128
    $region61: #{tpu_custom_call.1} parent=1 // pred_fallthru
      _
    // Predicated region
    $region62: #{tpu_custom_call.1} parent=1 // pred_check
      _
    $region63: #{tpu_custom_call.1} parent=1 // pred_check_branch
      %2283 = sbr.rel (0) target = $region65
    $region64: #{tpu_custom_call.1} parent=1 // pred_region
      %2284 = dma.done [#allocation8], 1024
    $region65: #{tpu_custom_call.1} parent=1 // pred_fallthru
      _
    // Predicated region
    $region66: #{tpu_custom_call.1} parent=1 // pred_check
      _
    $region67: #{tpu_custom_call.1} parent=1 // pred_check_branch
      %2286 = sbr.rel (0) target = $region69
    $region68: #{tpu_custom_call.1} parent=1 // pred_region
      %2287 = dma.done [#allocation8], 128
    $region69: #{tpu_custom_call.1} parent=1 // pred_fallthru
      _
    // Predicated region
    $region70: #{tpu_custom_call.1} parent=1 // pred_check
      _
    $region71: #{tpu_custom_call.1} parent=1 // pred_check_branch
      %2289 = sbr.rel (0) target = $region73
    $region72: #{tpu_custom_call.1} parent=1 // pred_region
      %2290 = dma.done [#allocation11], 128
    $region73: #{tpu_custom_call.1} parent=1 // pred_fallthru
      _
    %2291 = vsyncpa [#allocation4], 1
    %2292 = vsyncpa [#allocation5], 1
    %2293 = vsyncpa [#allocation8], 1
    %2294 = vsyncpa [#allocation11], 1

</llo_original>
